<compile_context>
chip_gen: v5e
topology: v5e:2x2
jax: 0.10.0
libtpu: 0.0.40
codegen_flags: <defaults>
</compile_context>

<pallas_src>
import math
import functools

import numpy as np
import jax
import jax.numpy as jnp
from jax.experimental import pallas as pl
from jax.experimental.pallas import tpu as pltpu


def _scale_geometry(T, W, H, n):
    """MaxPool3d(kernel=ceil(dim/n), stride=floor(dim/n)) output geometry."""
    t_r, w_r, h_r = math.ceil(T / n), math.ceil(W / n), math.ceil(H / n)
    s_t, s_w, s_h = T // n, W // n, H // n
    if s_t == 0 or s_w == 0 or s_h == 0:
        raise ValueError(
            f"out_side entry {n} is larger than an input dim (T={T}, W={W}, H={H})")
    n_t = (T - t_r) // s_t + 1
    n_w = (W - w_r) // s_w + 1
    n_h = (H - h_r) // s_h + 1
    return t_r, w_r, h_r, s_t, s_w, s_h, n_t, n_w, n_h


def _choose_tile_c(C, T, W, H, itemsize, budget_bytes=6 * 1024 * 1024):
    """Largest legal channel tile whose input block stays within budget_bytes.

    The lane (last) block dim must either equal C (full extent) or be a
    multiple of 128 to satisfy the (8, 128) BlockSpec divisibility rule.
    The budget is sized for v7x's 64 MiB VMEM (double buffering included).
    """
    per_c = T * W * H * itemsize
    max_c = max(1, budget_bytes // per_c)
    if C <= max_c:
        return C
    lane_divs = [d for d in range(128, C + 1, 128) if C % d == 0 and d <= max_c]
    if lane_divs:
        return max(lane_divs)
    return C  # no smaller legal tile; fall back to full C and rely on vmem limit.


def _tmp3d_kernel(x_ref, o_ref, *, scales, hierarchical, N, T, W, H):
    """Fused spatial max-pool + spatial mean + temporal multiply pooling.

    x_ref: (1, T, W, H, C_tile) block, channels on lanes.
    o_ref: (1, t_total, C_tile) block, lane-dense output.
    """
    x = x_ref[0].astype(jnp.float32)                    # (T, W, H, Ct)

    temps = []                                          # one (Ct,) per output slot

    if hierarchical:
        # Finest-scale (n = N) pooled maxima.  Only leading (T, W) axes are
        # sliced, so the window maxima lower to full-width VPU maxima between
        # vregs; the tiny per-window H reduction happens on the already
        # (H, Ct)-reduced tile.
        tN, wN, hN = T // N, W // N, H // N
        p = {}                                          # (ot, ow, oh) -> (Ct,)
        for ot in range(N):
            for ow in range(N):
                win = x[ot * tN:(ot + 1) * tN, ow * wN:(ow + 1) * wN]  # (tN,wN,H,Ct)
                r = jnp.max(win, axis=1)                # (tN, H, Ct)  VPU
                r = jnp.max(r, axis=0)                  # (H, Ct)      VPU
                for oh in range(N):
                    p[(ot, ow, oh)] = jnp.max(r[oh * hN:(oh + 1) * hN, :], axis=0)

        for n, (t_r, w_r, h_r, s_t, s_w, s_h, n_t, n_w, n_h) in scales:
            rr = N // n                  # fine windows per coarse window per dim
            inv = 1.0 / float(n_w * n_h)
            # Under the hierarchical conditions n_t == n_w == n_h == n and the
            # temporal group size n_t // n == 1, so multiply pooling reduces to
            # the spatial mean of each coarse temporal slice.
            for i in range(n_t):
                acc = None
                for ow in range(n_w):
                    for oh in range(n_h):
                        g = None          # coarse window max = max of fine maxima
                        for a in range(i * rr, (i + 1) * rr):
                            for b in range(ow * rr, (ow + 1) * rr):
                                for c in range(oh * rr, (oh + 1) * rr):
                                    v = p[(a, b, c)]
                                    g = v if g is None else jnp.maximum(g, v)
                        acc = g if acc is None else acc + g
                temps.append(acc * inv)
    else:
        # General fallback: direct window scan per scale.  Exact PyTorch
        # semantics, including overlapping windows, n_t > n, and output slots
        # i >= n that stay 1.
        for n, (t_r, w_r, h_r, s_t, s_w, s_h, n_t, n_w, n_h) in scales:
            inv = 1.0 / float(n_w * n_h)
            y = []
            for ot in range(n_t):
                acc = None
                for ow in range(n_w):
                    for oh in range(n_h):
                        win = x[ot * s_t:ot * s_t + t_r,
                                ow * s_w:ow * s_w + w_r,
                                oh * s_h:oh * s_h + h_r]   # (t_r, w_r, h_r, Ct)
                        r = jnp.max(win, axis=1)           # (t_r, h_r, Ct)
                        r = jnp.max(r, axis=0)             # (h_r, Ct)
                        r = jnp.max(r, axis=0)             # (Ct,)
                        acc = r if acc is None else acc + r
                y.append(acc * inv)
            g = n_t // n
            for i in range(n_t):
                if i < n and g > 0:
                    prod = y[g * i]
                    for j in range(g * i + 1, g * (i + 1)):
                        prod = prod * y[j]
                else:
                    prod = jnp.ones_like(y[0])
                temps.append(prod)

    # Single lane-dense store: (t_total, Ct) with channels on lanes.
    o_ref[0] = jnp.stack(temps, axis=0).astype(o_ref.dtype)


def temporal_multiply_pool3d(x, out_side=(1, 2, 4)):
    """Pallas implementation of TemporalMultipyPool3D.forward (NCDHW input)."""
    B, C, T, W, H = x.shape
    scales = tuple((n, _scale_geometry(T, W, H, n)) for n in out_side)
    t_tot = sum(geom[6] for _, geom in scales)

    N = max(out_side)
    hierarchical = (T % N == 0 and W % N == 0 and H % N == 0
                    and all(N % n == 0 for n in out_side))

    # Layout plumbing (cheap relative to the HBM-bound kernel): channels last so
    # C sits on the lane axis inside the kernel.
    xt = jnp.transpose(x, (0, 2, 3, 4, 1))              # (B, T, W, H, C)

    itemsize = np.dtype(x.dtype).itemsize
    tile_c = _choose_tile_c(C, T, W, H, itemsize)
    n_ct = C // tile_c

    in_block_bytes = T * W * H * tile_c * itemsize
    f32_copy_bytes = T * W * H * tile_c * 4
    out_block_bytes = t_tot * tile_c * 4
    vmem_limit = int(min(48 * 2**20,                    # stay inside v7x's 64 MiB VMEM
                         max(16 * 2**20,
                             2 * in_block_bytes + f32_copy_bytes
                             + 4 * out_block_bytes + (2 << 20))))

    kernel = functools.partial(
        _tmp3d_kernel, scales=scales, hierarchical=hierarchical,
        N=N, T=T, W=W, H=H)

    out_tc = pl.pallas_call(
        kernel,
        out_shape=jax.ShapeDtypeStruct((B, t_tot, C), jnp.float32),
        grid=(B, n_ct),
        in_specs=[pl.BlockSpec((1, T, W, H, tile_c),
                               lambda b, c: (b, 0, 0, 0, c))],
        out_specs=pl.BlockSpec((1, t_tot, tile_c), lambda b, c: (b, 0, c)),
        compiler_params=pltpu.CompilerParams(
            dimension_semantics=("parallel", "parallel"),
            vmem_limit_bytes=vmem_limit),
    )(xt)

    out = jnp.transpose(out_tc, (0, 2, 1))              # (B, C, t_tot)
    return out.reshape(B, C, t_tot, 1, 1)


def _reference(x, out_side):
    """Pure numpy reference mirroring the PyTorch forward."""
    x = np.asarray(x)
    B, C, T, W, H = x.shape
    outs = []
    for n in out_side:
        t_r, w_r, h_r = math.ceil(T / n), math.ceil(W / n), math.ceil(H / n)
        s_t, s_w, s_h = T // n, W // n, H // n
        n_t = (T - t_r) // s_t + 1
        n_w = (W - w_r) // s_w + 1
        n_h = (H - h_r) // s_h + 1
        y = np.zeros((B, C, n_t, n_w, n_h), np.float32)
        for ot in range(n_t):
            for ow in range(n_w):
                for oh in range(n_h):
                    win = x[:, :,
                            ot * s_t: ot * s_t + t_r,
                            ow * s_w: ow * s_w + w_r,
                            oh * s_h: oh * s_h + h_r]
                    y[:, :, ot, ow, oh] = win.max(axis=(2, 3, 4))
        y = y.mean(axis=(3, 4))                          # (B, C, n_t)
        temp = np.ones_like(y)
        g = n_t // n
        for i in range(n):
            for j in range(g * i, g * (i + 1)):
                temp[:, :, i] *= y[:, :, j]
        outs.append(temp)
    out = np.concatenate(outs, axis=2)
    return out.reshape(B, C, -1, 1, 1)


if __name__ == "__main__":
    key = jax.random.PRNGKey(0)
    out_side = (1, 2, 4)

    # Test 1: divisible dims -> fused hierarchical (max-of-maxes) path.
    B, C, T, W, H = 2, 4, 8, 16, 16
    x = jax.random.normal(key, (B, C, T, W, H), dtype=jnp.float32)
    out = jax.block_until_ready(temporal_multiply_pool3d(x, out_side))
    ref = _reference(x, out_side)
    assert out.shape == ref.shape == (B, C, sum(out_side), 1, 1), (out.shape, ref.shape)
    np.testing.assert_allclose(np.asarray(out), ref, rtol=1e-5, atol=1e-5)

    # Test 2: non-divisible dims -> general fallback path (overlapping windows,
    # n_t > n, trailing output slots stay 1), exactly like the PyTorch module.
    B2, C2, T2, W2, H2 = 1, 4, 6, 10, 12
    x2 = jax.random.normal(jax.random.PRNGKey(1), (B2, C2, T2, W2, H2),
                           dtype=jnp.float32)
    out2 = jax.block_until_ready(temporal_multiply_pool3d(x2, out_side))
    ref2 = _reference(x2, out_side)
    assert out2.shape == ref2.shape, (out2.shape, ref2.shape)
    np.testing.assert_allclose(np.asarray(out2), ref2, rtol=1e-5, atol=1e-5)

    print("KERNEL_OK")
</pallas_src>

<mosaic_0001>
module attributes {stable_mosaic.version = 11 : i64} {
  func.func @_tmp3d_kernel(%arg0: i32, %arg1: i32, %arg2: memref<1x8x16x16x4xf32, #tpu.memory_space<vmem>>, %arg3: memref<1x7x4xf32, #tpu.memory_space<vmem>>) attributes {dimension_semantics = [#tpu.dimension_semantics<parallel>, #tpu.dimension_semantics<parallel>], iteration_bounds = array<i64: 2, 1>, scalar_prefetch = 0 : i64, scratch_operands = 0 : i64, tpu.core_type = #tpu.core_type<tc>, window_params = [{transform_indices = @transform_0, window_bounds = array<i64: 1, 8, 16, 16, 4>}, {transform_indices = @transform_1, window_bounds = array<i64: 1, 7, 4>}]} {
    %c0 = arith.constant 0 : index
    %c0_0 = arith.constant 0 : index
    %c0_1 = arith.constant 0 : index
    %c0_2 = arith.constant 0 : index
    %c0_3 = arith.constant 0 : index
    %0 = vector.load %arg2[%c0, %c0_0, %c0_1, %c0_2, %c0_3] : memref<1x8x16x16x4xf32, #tpu.memory_space<vmem>>, vector<1x8x16x16x4xf32>
    %1 = vector.shape_cast %0 : vector<1x8x16x16x4xf32> to vector<8x16x16x4xf32>
    %2 = vector.extract_strided_slice %1 {offsets = [0, 0, 0, 0], sizes = [2, 4, 16, 4], strides = [1, 1, 1, 1]} : vector<8x16x16x4xf32> to vector<2x4x16x4xf32>
    %cst = arith.constant dense<0xFF800000> : vector<2x16x4xf32>
    %3 = vector.multi_reduction <maximumf>, %2, %cst [1] : vector<2x4x16x4xf32> to vector<2x16x4xf32>
    %cst_4 = arith.constant dense<0xFF800000> : vector<16x4xf32>
    %4 = vector.multi_reduction <maximumf>, %3, %cst_4 [0] : vector<2x16x4xf32> to vector<16x4xf32>
    %5 = vector.extract_strided_slice %4 {offsets = [0, 0], sizes = [4, 4], strides = [1, 1]} : vector<16x4xf32> to vector<4x4xf32>
    %cst_5 = arith.constant dense<0xFF800000> : vector<4xf32>
    %6 = vector.multi_reduction <maximumf>, %5, %cst_5 [0] : vector<4x4xf32> to vector<4xf32>
    %7 = vector.extract_strided_slice %4 {offsets = [4, 0], sizes = [4, 4], strides = [1, 1]} : vector<16x4xf32> to vector<4x4xf32>
    %cst_6 = arith.constant dense<0xFF800000> : vector<4xf32>
    %8 = vector.multi_reduction <maximumf>, %7, %cst_6 [0] : vector<4x4xf32> to vector<4xf32>
    %9 = vector.extract_strided_slice %4 {offsets = [8, 0], sizes = [4, 4], strides = [1, 1]} : vector<16x4xf32> to vector<4x4xf32>
    %cst_7 = arith.constant dense<0xFF800000> : vector<4xf32>
    %10 = vector.multi_reduction <maximumf>, %9, %cst_7 [0] : vector<4x4xf32> to vector<4xf32>
    %11 = vector.extract_strided_slice %4 {offsets = [12, 0], sizes = [4, 4], strides = [1, 1]} : vector<16x4xf32> to vector<4x4xf32>
    %cst_8 = arith.constant dense<0xFF800000> : vector<4xf32>
    %12 = vector.multi_reduction <maximumf>, %11, %cst_8 [0] : vector<4x4xf32> to vector<4xf32>
    %13 = vector.extract_strided_slice %1 {offsets = [0, 4, 0, 0], sizes = [2, 4, 16, 4], strides = [1, 1, 1, 1]} : vector<8x16x16x4xf32> to vector<2x4x16x4xf32>
    %cst_9 = arith.constant dense<0xFF800000> : vector<2x16x4xf32>
    %14 = vector.multi_reduction <maximumf>, %13, %cst_9 [1] : vector<2x4x16x4xf32> to vector<2x16x4xf32>
    %cst_10 = arith.constant dense<0xFF800000> : vector<16x4xf32>
    %15 = vector.multi_reduction <maximumf>, %14, %cst_10 [0] : vector<2x16x4xf32> to vector<16x4xf32>
    %16 = vector.extract_strided_slice %15 {offsets = [0, 0], sizes = [4, 4], strides = [1, 1]} : vector<16x4xf32> to vector<4x4xf32>
    %cst_11 = arith.constant dense<0xFF800000> : vector<4xf32>
    %17 = vector.multi_reduction <maximumf>, %16, %cst_11 [0] : vector<4x4xf32> to vector<4xf32>
    %18 = vector.extract_strided_slice %15 {offsets = [4, 0], sizes = [4, 4], strides = [1, 1]} : vector<16x4xf32> to vector<4x4xf32>
    %cst_12 = arith.constant dense<0xFF800000> : vector<4xf32>
    %19 = vector.multi_reduction <maximumf>, %18, %cst_12 [0] : vector<4x4xf32> to vector<4xf32>
    %20 = vector.extract_strided_slice %15 {offsets = [8, 0], sizes = [4, 4], strides = [1, 1]} : vector<16x4xf32> to vector<4x4xf32>
    %cst_13 = arith.constant dense<0xFF800000> : vector<4xf32>
    %21 = vector.multi_reduction <maximumf>, %20, %cst_13 [0] : vector<4x4xf32> to vector<4xf32>
    %22 = vector.extract_strided_slice %15 {offsets = [12, 0], sizes = [4, 4], strides = [1, 1]} : vector<16x4xf32> to vector<4x4xf32>
    %cst_14 = arith.constant dense<0xFF800000> : vector<4xf32>
    %23 = vector.multi_reduction <maximumf>, %22, %cst_14 [0] : vector<4x4xf32> to vector<4xf32>
    %24 = vector.extract_strided_slice %1 {offsets = [0, 8, 0, 0], sizes = [2, 4, 16, 4], strides = [1, 1, 1, 1]} : vector<8x16x16x4xf32> to vector<2x4x16x4xf32>
    %cst_15 = arith.constant dense<0xFF800000> : vector<2x16x4xf32>
    %25 = vector.multi_reduction <maximumf>, %24, %cst_15 [1] : vector<2x4x16x4xf32> to vector<2x16x4xf32>
    %cst_16 = arith.constant dense<0xFF800000> : vector<16x4xf32>
    %26 = vector.multi_reduction <maximumf>, %25, %cst_16 [0] : vector<2x16x4xf32> to vector<16x4xf32>
    %27 = vector.extract_strided_slice %26 {offsets = [0, 0], sizes = [4, 4], strides = [1, 1]} : vector<16x4xf32> to vector<4x4xf32>
    %cst_17 = arith.constant dense<0xFF800000> : vector<4xf32>
    %28 = vector.multi_reduction <maximumf>, %27, %cst_17 [0] : vector<4x4xf32> to vector<4xf32>
    %29 = vector.extract_strided_slice %26 {offsets = [4, 0], sizes = [4, 4], strides = [1, 1]} : vector<16x4xf32> to vector<4x4xf32>
    %cst_18 = arith.constant dense<0xFF800000> : vector<4xf32>
    %30 = vector.multi_reduction <maximumf>, %29, %cst_18 [0] : vector<4x4xf32> to vector<4xf32>
    %31 = vector.extract_strided_slice %26 {offsets = [8, 0], sizes = [4, 4], strides = [1, 1]} : vector<16x4xf32> to vector<4x4xf32>
    %cst_19 = arith.constant dense<0xFF800000> : vector<4xf32>
    %32 = vector.multi_reduction <maximumf>, %31, %cst_19 [0] : vector<4x4xf32> to vector<4xf32>
    %33 = vector.extract_strided_slice %26 {offsets = [12, 0], sizes = [4, 4], strides = [1, 1]} : vector<16x4xf32> to vector<4x4xf32>
    %cst_20 = arith.constant dense<0xFF800000> : vector<4xf32>
    %34 = vector.multi_reduction <maximumf>, %33, %cst_20 [0] : vector<4x4xf32> to vector<4xf32>
    %35 = vector.extract_strided_slice %1 {offsets = [0, 12, 0, 0], sizes = [2, 4, 16, 4], strides = [1, 1, 1, 1]} : vector<8x16x16x4xf32> to vector<2x4x16x4xf32>
    %cst_21 = arith.constant dense<0xFF800000> : vector<2x16x4xf32>
    %36 = vector.multi_reduction <maximumf>, %35, %cst_21 [1] : vector<2x4x16x4xf32> to vector<2x16x4xf32>
    %cst_22 = arith.constant dense<0xFF800000> : vector<16x4xf32>
    %37 = vector.multi_reduction <maximumf>, %36, %cst_22 [0] : vector<2x16x4xf32> to vector<16x4xf32>
    %38 = vector.extract_strided_slice %37 {offsets = [0, 0], sizes = [4, 4], strides = [1, 1]} : vector<16x4xf32> to vector<4x4xf32>
    %cst_23 = arith.constant dense<0xFF800000> : vector<4xf32>
    %39 = vector.multi_reduction <maximumf>, %38, %cst_23 [0] : vector<4x4xf32> to vector<4xf32>
    %40 = vector.extract_strided_slice %37 {offsets = [4, 0], sizes = [4, 4], strides = [1, 1]} : vector<16x4xf32> to vector<4x4xf32>
    %cst_24 = arith.constant dense<0xFF800000> : vector<4xf32>
    %41 = vector.multi_reduction <maximumf>, %40, %cst_24 [0] : vector<4x4xf32> to vector<4xf32>
    %42 = vector.extract_strided_slice %37 {offsets = [8, 0], sizes = [4, 4], strides = [1, 1]} : vector<16x4xf32> to vector<4x4xf32>
    %cst_25 = arith.constant dense<0xFF800000> : vector<4xf32>
    %43 = vector.multi_reduction <maximumf>, %42, %cst_25 [0] : vector<4x4xf32> to vector<4xf32>
    %44 = vector.extract_strided_slice %37 {offsets = [12, 0], sizes = [4, 4], strides = [1, 1]} : vector<16x4xf32> to vector<4x4xf32>
    %cst_26 = arith.constant dense<0xFF800000> : vector<4xf32>
    %45 = vector.multi_reduction <maximumf>, %44, %cst_26 [0] : vector<4x4xf32> to vector<4xf32>
    %46 = vector.extract_strided_slice %1 {offsets = [2, 0, 0, 0], sizes = [2, 4, 16, 4], strides = [1, 1, 1, 1]} : vector<8x16x16x4xf32> to vector<2x4x16x4xf32>
    %cst_27 = arith.constant dense<0xFF800000> : vector<2x16x4xf32>
    %47 = vector.multi_reduction <maximumf>, %46, %cst_27 [1] : vector<2x4x16x4xf32> to vector<2x16x4xf32>
    %cst_28 = arith.constant dense<0xFF800000> : vector<16x4xf32>
    %48 = vector.multi_reduction <maximumf>, %47, %cst_28 [0] : vector<2x16x4xf32> to vector<16x4xf32>
    %49 = vector.extract_strided_slice %48 {offsets = [0, 0], sizes = [4, 4], strides = [1, 1]} : vector<16x4xf32> to vector<4x4xf32>
    %cst_29 = arith.constant dense<0xFF800000> : vector<4xf32>
    %50 = vector.multi_reduction <maximumf>, %49, %cst_29 [0] : vector<4x4xf32> to vector<4xf32>
    %51 = vector.extract_strided_slice %48 {offsets = [4, 0], sizes = [4, 4], strides = [1, 1]} : vector<16x4xf32> to vector<4x4xf32>
    %cst_30 = arith.constant dense<0xFF800000> : vector<4xf32>
    %52 = vector.multi_reduction <maximumf>, %51, %cst_30 [0] : vector<4x4xf32> to vector<4xf32>
    %53 = vector.extract_strided_slice %48 {offsets = [8, 0], sizes = [4, 4], strides = [1, 1]} : vector<16x4xf32> to vector<4x4xf32>
    %cst_31 = arith.constant dense<0xFF800000> : vector<4xf32>
    %54 = vector.multi_reduction <maximumf>, %53, %cst_31 [0] : vector<4x4xf32> to vector<4xf32>
    %55 = vector.extract_strided_slice %48 {offsets = [12, 0], sizes = [4, 4], strides = [1, 1]} : vector<16x4xf32> to vector<4x4xf32>
    %cst_32 = arith.constant dense<0xFF800000> : vector<4xf32>
    %56 = vector.multi_reduction <maximumf>, %55, %cst_32 [0] : vector<4x4xf32> to vector<4xf32>
    %57 = vector.extract_strided_slice %1 {offsets = [2, 4, 0, 0], sizes = [2, 4, 16, 4], strides = [1, 1, 1, 1]} : vector<8x16x16x4xf32> to vector<2x4x16x4xf32>
    %cst_33 = arith.constant dense<0xFF800000> : vector<2x16x4xf32>
    %58 = vector.multi_reduction <maximumf>, %57, %cst_33 [1] : vector<2x4x16x4xf32> to vector<2x16x4xf32>
    %cst_34 = arith.constant dense<0xFF800000> : vector<16x4xf32>
    %59 = vector.multi_reduction <maximumf>, %58, %cst_34 [0] : vector<2x16x4xf32> to vector<16x4xf32>
    %60 = vector.extract_strided_slice %59 {offsets = [0, 0], sizes = [4, 4], strides = [1, 1]} : vector<16x4xf32> to vector<4x4xf32>
    %cst_35 = arith.constant dense<0xFF800000> : vector<4xf32>
    %61 = vector.multi_reduction <maximumf>, %60, %cst_35 [0] : vector<4x4xf32> to vector<4xf32>
    %62 = vector.extract_strided_slice %59 {offsets = [4, 0], sizes = [4, 4], strides = [1, 1]} : vector<16x4xf32> to vector<4x4xf32>
    %cst_36 = arith.constant dense<0xFF800000> : vector<4xf32>
    %63 = vector.multi_reduction <maximumf>, %62, %cst_36 [0] : vector<4x4xf32> to vector<4xf32>
    %64 = vector.extract_strided_slice %59 {offsets = [8, 0], sizes = [4, 4], strides = [1, 1]} : vector<16x4xf32> to vector<4x4xf32>
    %cst_37 = arith.constant dense<0xFF800000> : vector<4xf32>
    %65 = vector.multi_reduction <maximumf>, %64, %cst_37 [0] : vector<4x4xf32> to vector<4xf32>
    %66 = vector.extract_strided_slice %59 {offsets = [12, 0], sizes = [4, 4], strides = [1, 1]} : vector<16x4xf32> to vector<4x4xf32>
    %cst_38 = arith.constant dense<0xFF800000> : vector<4xf32>
    %67 = vector.multi_reduction <maximumf>, %66, %cst_38 [0] : vector<4x4xf32> to vector<4xf32>
    %68 = vector.extract_strided_slice %1 {offsets = [2, 8, 0, 0], sizes = [2, 4, 16, 4], strides = [1, 1, 1, 1]} : vector<8x16x16x4xf32> to vector<2x4x16x4xf32>
    %cst_39 = arith.constant dense<0xFF800000> : vector<2x16x4xf32>
    %69 = vector.multi_reduction <maximumf>, %68, %cst_39 [1] : vector<2x4x16x4xf32> to vector<2x16x4xf32>
    %cst_40 = arith.constant dense<0xFF800000> : vector<16x4xf32>
    %70 = vector.multi_reduction <maximumf>, %69, %cst_40 [0] : vector<2x16x4xf32> to vector<16x4xf32>
    %71 = vector.extract_strided_slice %70 {offsets = [0, 0], sizes = [4, 4], strides = [1, 1]} : vector<16x4xf32> to vector<4x4xf32>
    %cst_41 = arith.constant dense<0xFF800000> : vector<4xf32>
    %72 = vector.multi_reduction <maximumf>, %71, %cst_41 [0] : vector<4x4xf32> to vector<4xf32>
    %73 = vector.extract_strided_slice %70 {offsets = [4, 0], sizes = [4, 4], strides = [1, 1]} : vector<16x4xf32> to vector<4x4xf32>
    %cst_42 = arith.constant dense<0xFF800000> : vector<4xf32>
    %74 = vector.multi_reduction <maximumf>, %73, %cst_42 [0] : vector<4x4xf32> to vector<4xf32>
    %75 = vector.extract_strided_slice %70 {offsets = [8, 0], sizes = [4, 4], strides = [1, 1]} : vector<16x4xf32> to vector<4x4xf32>
    %cst_43 = arith.constant dense<0xFF800000> : vector<4xf32>
    %76 = vector.multi_reduction <maximumf>, %75, %cst_43 [0] : vector<4x4xf32> to vector<4xf32>
    %77 = vector.extract_strided_slice %70 {offsets = [12, 0], sizes = [4, 4], strides = [1, 1]} : vector<16x4xf32> to vector<4x4xf32>
    %cst_44 = arith.constant dense<0xFF800000> : vector<4xf32>
    %78 = vector.multi_reduction <maximumf>, %77, %cst_44 [0] : vector<4x4xf32> to vector<4xf32>
    %79 = vector.extract_strided_slice %1 {offsets = [2, 12, 0, 0], sizes = [2, 4, 16, 4], strides = [1, 1, 1, 1]} : vector<8x16x16x4xf32> to vector<2x4x16x4xf32>
    %cst_45 = arith.constant dense<0xFF800000> : vector<2x16x4xf32>
    %80 = vector.multi_reduction <maximumf>, %79, %cst_45 [1] : vector<2x4x16x4xf32> to vector<2x16x4xf32>
    %cst_46 = arith.constant dense<0xFF800000> : vector<16x4xf32>
    %81 = vector.multi_reduction <maximumf>, %80, %cst_46 [0] : vector<2x16x4xf32> to vector<16x4xf32>
    %82 = vector.extract_strided_slice %81 {offsets = [0, 0], sizes = [4, 4], strides = [1, 1]} : vector<16x4xf32> to vector<4x4xf32>
    %cst_47 = arith.constant dense<0xFF800000> : vector<4xf32>
    %83 = vector.multi_reduction <maximumf>, %82, %cst_47 [0] : vector<4x4xf32> to vector<4xf32>
    %84 = vector.extract_strided_slice %81 {offsets = [4, 0], sizes = [4, 4], strides = [1, 1]} : vector<16x4xf32> to vector<4x4xf32>
    %cst_48 = arith.constant dense<0xFF800000> : vector<4xf32>
    %85 = vector.multi_reduction <maximumf>, %84, %cst_48 [0] : vector<4x4xf32> to vector<4xf32>
    %86 = vector.extract_strided_slice %81 {offsets = [8, 0], sizes = [4, 4], strides = [1, 1]} : vector<16x4xf32> to vector<4x4xf32>
    %cst_49 = arith.constant dense<0xFF800000> : vector<4xf32>
    %87 = vector.multi_reduction <maximumf>, %86, %cst_49 [0] : vector<4x4xf32> to vector<4xf32>
    %88 = vector.extract_strided_slice %81 {offsets = [12, 0], sizes = [4, 4], strides = [1, 1]} : vector<16x4xf32> to vector<4x4xf32>
    %cst_50 = arith.constant dense<0xFF800000> : vector<4xf32>
    %89 = vector.multi_reduction <maximumf>, %88, %cst_50 [0] : vector<4x4xf32> to vector<4xf32>
    %90 = vector.extract_strided_slice %1 {offsets = [4, 0, 0, 0], sizes = [2, 4, 16, 4], strides = [1, 1, 1, 1]} : vector<8x16x16x4xf32> to vector<2x4x16x4xf32>
    %cst_51 = arith.constant dense<0xFF800000> : vector<2x16x4xf32>
    %91 = vector.multi_reduction <maximumf>, %90, %cst_51 [1] : vector<2x4x16x4xf32> to vector<2x16x4xf32>
    %cst_52 = arith.constant dense<0xFF800000> : vector<16x4xf32>
    %92 = vector.multi_reduction <maximumf>, %91, %cst_52 [0] : vector<2x16x4xf32> to vector<16x4xf32>
    %93 = vector.extract_strided_slice %92 {offsets = [0, 0], sizes = [4, 4], strides = [1, 1]} : vector<16x4xf32> to vector<4x4xf32>
    %cst_53 = arith.constant dense<0xFF800000> : vector<4xf32>
    %94 = vector.multi_reduction <maximumf>, %93, %cst_53 [0] : vector<4x4xf32> to vector<4xf32>
    %95 = vector.extract_strided_slice %92 {offsets = [4, 0], sizes = [4, 4], strides = [1, 1]} : vector<16x4xf32> to vector<4x4xf32>
    %cst_54 = arith.constant dense<0xFF800000> : vector<4xf32>
    %96 = vector.multi_reduction <maximumf>, %95, %cst_54 [0] : vector<4x4xf32> to vector<4xf32>
    %97 = vector.extract_strided_slice %92 {offsets = [8, 0], sizes = [4, 4], strides = [1, 1]} : vector<16x4xf32> to vector<4x4xf32>
    %cst_55 = arith.constant dense<0xFF800000> : vector<4xf32>
    %98 = vector.multi_reduction <maximumf>, %97, %cst_55 [0] : vector<4x4xf32> to vector<4xf32>
    %99 = vector.extract_strided_slice %92 {offsets = [12, 0], sizes = [4, 4], strides = [1, 1]} : vector<16x4xf32> to vector<4x4xf32>
    %cst_56 = arith.constant dense<0xFF800000> : vector<4xf32>
    %100 = vector.multi_reduction <maximumf>, %99, %cst_56 [0] : vector<4x4xf32> to vector<4xf32>
    %101 = vector.extract_strided_slice %1 {offsets = [4, 4, 0, 0], sizes = [2, 4, 16, 4], strides = [1, 1, 1, 1]} : vector<8x16x16x4xf32> to vector<2x4x16x4xf32>
    %cst_57 = arith.constant dense<0xFF800000> : vector<2x16x4xf32>
    %102 = vector.multi_reduction <maximumf>, %101, %cst_57 [1] : vector<2x4x16x4xf32> to vector<2x16x4xf32>
    %cst_58 = arith.constant dense<0xFF800000> : vector<16x4xf32>
    %103 = vector.multi_reduction <maximumf>, %102, %cst_58 [0] : vector<2x16x4xf32> to vector<16x4xf32>
    %104 = vector.extract_strided_slice %103 {offsets = [0, 0], sizes = [4, 4], strides = [1, 1]} : vector<16x4xf32> to vector<4x4xf32>
    %cst_59 = arith.constant dense<0xFF800000> : vector<4xf32>
    %105 = vector.multi_reduction <maximumf>, %104, %cst_59 [0] : vector<4x4xf32> to vector<4xf32>
    %106 = vector.extract_strided_slice %103 {offsets = [4, 0], sizes = [4, 4], strides = [1, 1]} : vector<16x4xf32> to vector<4x4xf32>
    %cst_60 = arith.constant dense<0xFF800000> : vector<4xf32>
    %107 = vector.multi_reduction <maximumf>, %106, %cst_60 [0] : vector<4x4xf32> to vector<4xf32>
    %108 = vector.extract_strided_slice %103 {offsets = [8, 0], sizes = [4, 4], strides = [1, 1]} : vector<16x4xf32> to vector<4x4xf32>
    %cst_61 = arith.constant dense<0xFF800000> : vector<4xf32>
    %109 = vector.multi_reduction <maximumf>, %108, %cst_61 [0] : vector<4x4xf32> to vector<4xf32>
    %110 = vector.extract_strided_slice %103 {offsets = [12, 0], sizes = [4, 4], strides = [1, 1]} : vector<16x4xf32> to vector<4x4xf32>
    %cst_62 = arith.constant dense<0xFF800000> : vector<4xf32>
    %111 = vector.multi_reduction <maximumf>, %110, %cst_62 [0] : vector<4x4xf32> to vector<4xf32>
    %112 = vector.extract_strided_slice %1 {offsets = [4, 8, 0, 0], sizes = [2, 4, 16, 4], strides = [1, 1, 1, 1]} : vector<8x16x16x4xf32> to vector<2x4x16x4xf32>
    %cst_63 = arith.constant dense<0xFF800000> : vector<2x16x4xf32>
    %113 = vector.multi_reduction <maximumf>, %112, %cst_63 [1] : vector<2x4x16x4xf32> to vector<2x16x4xf32>
    %cst_64 = arith.constant dense<0xFF800000> : vector<16x4xf32>
    %114 = vector.multi_reduction <maximumf>, %113, %cst_64 [0] : vector<2x16x4xf32> to vector<16x4xf32>
    %115 = vector.extract_strided_slice %114 {offsets = [0, 0], sizes = [4, 4], strides = [1, 1]} : vector<16x4xf32> to vector<4x4xf32>
    %cst_65 = arith.constant dense<0xFF800000> : vector<4xf32>
    %116 = vector.multi_reduction <maximumf>, %115, %cst_65 [0] : vector<4x4xf32> to vector<4xf32>
    %117 = vector.extract_strided_slice %114 {offsets = [4, 0], sizes = [4, 4], strides = [1, 1]} : vector<16x4xf32> to vector<4x4xf32>
    %cst_66 = arith.constant dense<0xFF800000> : vector<4xf32>
    %118 = vector.multi_reduction <maximumf>, %117, %cst_66 [0] : vector<4x4xf32> to vector<4xf32>
    %119 = vector.extract_strided_slice %114 {offsets = [8, 0], sizes = [4, 4], strides = [1, 1]} : vector<16x4xf32> to vector<4x4xf32>
    %cst_67 = arith.constant dense<0xFF800000> : vector<4xf32>
    %120 = vector.multi_reduction <maximumf>, %119, %cst_67 [0] : vector<4x4xf32> to vector<4xf32>
    %121 = vector.extract_strided_slice %114 {offsets = [12, 0], sizes = [4, 4], strides = [1, 1]} : vector<16x4xf32> to vector<4x4xf32>
    %cst_68 = arith.constant dense<0xFF800000> : vector<4xf32>
    %122 = vector.multi_reduction <maximumf>, %121, %cst_68 [0] : vector<4x4xf32> to vector<4xf32>
    %123 = vector.extract_strided_slice %1 {offsets = [4, 12, 0, 0], sizes = [2, 4, 16, 4], strides = [1, 1, 1, 1]} : vector<8x16x16x4xf32> to vector<2x4x16x4xf32>
    %cst_69 = arith.constant dense<0xFF800000> : vector<2x16x4xf32>
    %124 = vector.multi_reduction <maximumf>, %123, %cst_69 [1] : vector<2x4x16x4xf32> to vector<2x16x4xf32>
    %cst_70 = arith.constant dense<0xFF800000> : vector<16x4xf32>
    %125 = vector.multi_reduction <maximumf>, %124, %cst_70 [0] : vector<2x16x4xf32> to vector<16x4xf32>
    %126 = vector.extract_strided_slice %125 {offsets = [0, 0], sizes = [4, 4], strides = [1, 1]} : vector<16x4xf32> to vector<4x4xf32>
    %cst_71 = arith.constant dense<0xFF800000> : vector<4xf32>
    %127 = vector.multi_reduction <maximumf>, %126, %cst_71 [0] : vector<4x4xf32> to vector<4xf32>
    %128 = vector.extract_strided_slice %125 {offsets = [4, 0], sizes = [4, 4], strides = [1, 1]} : vector<16x4xf32> to vector<4x4xf32>
    %cst_72 = arith.constant dense<0xFF800000> : vector<4xf32>
    %129 = vector.multi_reduction <maximumf>, %128, %cst_72 [0] : vector<4x4xf32> to vector<4xf32>
    %130 = vector.extract_strided_slice %125 {offsets = [8, 0], sizes = [4, 4], strides = [1, 1]} : vector<16x4xf32> to vector<4x4xf32>
    %cst_73 = arith.constant dense<0xFF800000> : vector<4xf32>
    %131 = vector.multi_reduction <maximumf>, %130, %cst_73 [0] : vector<4x4xf32> to vector<4xf32>
    %132 = vector.extract_strided_slice %125 {offsets = [12, 0], sizes = [4, 4], strides = [1, 1]} : vector<16x4xf32> to vector<4x4xf32>
    %cst_74 = arith.constant dense<0xFF800000> : vector<4xf32>
    %133 = vector.multi_reduction <maximumf>, %132, %cst_74 [0] : vector<4x4xf32> to vector<4xf32>
    %134 = vector.extract_strided_slice %1 {offsets = [6, 0, 0, 0], sizes = [2, 4, 16, 4], strides = [1, 1, 1, 1]} : vector<8x16x16x4xf32> to vector<2x4x16x4xf32>
    %cst_75 = arith.constant dense<0xFF800000> : vector<2x16x4xf32>
    %135 = vector.multi_reduction <maximumf>, %134, %cst_75 [1] : vector<2x4x16x4xf32> to vector<2x16x4xf32>
    %cst_76 = arith.constant dense<0xFF800000> : vector<16x4xf32>
    %136 = vector.multi_reduction <maximumf>, %135, %cst_76 [0] : vector<2x16x4xf32> to vector<16x4xf32>
    %137 = vector.extract_strided_slice %136 {offsets = [0, 0], sizes = [4, 4], strides = [1, 1]} : vector<16x4xf32> to vector<4x4xf32>
    %cst_77 = arith.constant dense<0xFF800000> : vector<4xf32>
    %138 = vector.multi_reduction <maximumf>, %137, %cst_77 [0] : vector<4x4xf32> to vector<4xf32>
    %139 = vector.extract_strided_slice %136 {offsets = [4, 0], sizes = [4, 4], strides = [1, 1]} : vector<16x4xf32> to vector<4x4xf32>
    %cst_78 = arith.constant dense<0xFF800000> : vector<4xf32>
    %140 = vector.multi_reduction <maximumf>, %139, %cst_78 [0] : vector<4x4xf32> to vector<4xf32>
    %141 = vector.extract_strided_slice %136 {offsets = [8, 0], sizes = [4, 4], strides = [1, 1]} : vector<16x4xf32> to vector<4x4xf32>
    %cst_79 = arith.constant dense<0xFF800000> : vector<4xf32>
    %142 = vector.multi_reduction <maximumf>, %141, %cst_79 [0] : vector<4x4xf32> to vector<4xf32>
    %143 = vector.extract_strided_slice %136 {offsets = [12, 0], sizes = [4, 4], strides = [1, 1]} : vector<16x4xf32> to vector<4x4xf32>
    %cst_80 = arith.constant dense<0xFF800000> : vector<4xf32>
    %144 = vector.multi_reduction <maximumf>, %143, %cst_80 [0] : vector<4x4xf32> to vector<4xf32>
    %145 = vector.extract_strided_slice %1 {offsets = [6, 4, 0, 0], sizes = [2, 4, 16, 4], strides = [1, 1, 1, 1]} : vector<8x16x16x4xf32> to vector<2x4x16x4xf32>
    %cst_81 = arith.constant dense<0xFF800000> : vector<2x16x4xf32>
    %146 = vector.multi_reduction <maximumf>, %145, %cst_81 [1] : vector<2x4x16x4xf32> to vector<2x16x4xf32>
    %cst_82 = arith.constant dense<0xFF800000> : vector<16x4xf32>
    %147 = vector.multi_reduction <maximumf>, %146, %cst_82 [0] : vector<2x16x4xf32> to vector<16x4xf32>
    %148 = vector.extract_strided_slice %147 {offsets = [0, 0], sizes = [4, 4], strides = [1, 1]} : vector<16x4xf32> to vector<4x4xf32>
    %cst_83 = arith.constant dense<0xFF800000> : vector<4xf32>
    %149 = vector.multi_reduction <maximumf>, %148, %cst_83 [0] : vector<4x4xf32> to vector<4xf32>
    %150 = vector.extract_strided_slice %147 {offsets = [4, 0], sizes = [4, 4], strides = [1, 1]} : vector<16x4xf32> to vector<4x4xf32>
    %cst_84 = arith.constant dense<0xFF800000> : vector<4xf32>
    %151 = vector.multi_reduction <maximumf>, %150, %cst_84 [0] : vector<4x4xf32> to vector<4xf32>
    %152 = vector.extract_strided_slice %147 {offsets = [8, 0], sizes = [4, 4], strides = [1, 1]} : vector<16x4xf32> to vector<4x4xf32>
    %cst_85 = arith.constant dense<0xFF800000> : vector<4xf32>
    %153 = vector.multi_reduction <maximumf>, %152, %cst_85 [0] : vector<4x4xf32> to vector<4xf32>
    %154 = vector.extract_strided_slice %147 {offsets = [12, 0], sizes = [4, 4], strides = [1, 1]} : vector<16x4xf32> to vector<4x4xf32>
    %cst_86 = arith.constant dense<0xFF800000> : vector<4xf32>
    %155 = vector.multi_reduction <maximumf>, %154, %cst_86 [0] : vector<4x4xf32> to vector<4xf32>
    %156 = vector.extract_strided_slice %1 {offsets = [6, 8, 0, 0], sizes = [2, 4, 16, 4], strides = [1, 1, 1, 1]} : vector<8x16x16x4xf32> to vector<2x4x16x4xf32>
    %cst_87 = arith.constant dense<0xFF800000> : vector<2x16x4xf32>
    %157 = vector.multi_reduction <maximumf>, %156, %cst_87 [1] : vector<2x4x16x4xf32> to vector<2x16x4xf32>
    %cst_88 = arith.constant dense<0xFF800000> : vector<16x4xf32>
    %158 = vector.multi_reduction <maximumf>, %157, %cst_88 [0] : vector<2x16x4xf32> to vector<16x4xf32>
    %159 = vector.extract_strided_slice %158 {offsets = [0, 0], sizes = [4, 4], strides = [1, 1]} : vector<16x4xf32> to vector<4x4xf32>
    %cst_89 = arith.constant dense<0xFF800000> : vector<4xf32>
    %160 = vector.multi_reduction <maximumf>, %159, %cst_89 [0] : vector<4x4xf32> to vector<4xf32>
    %161 = vector.extract_strided_slice %158 {offsets = [4, 0], sizes = [4, 4], strides = [1, 1]} : vector<16x4xf32> to vector<4x4xf32>
    %cst_90 = arith.constant dense<0xFF800000> : vector<4xf32>
    %162 = vector.multi_reduction <maximumf>, %161, %cst_90 [0] : vector<4x4xf32> to vector<4xf32>
    %163 = vector.extract_strided_slice %158 {offsets = [8, 0], sizes = [4, 4], strides = [1, 1]} : vector<16x4xf32> to vector<4x4xf32>
    %cst_91 = arith.constant dense<0xFF800000> : vector<4xf32>
    %164 = vector.multi_reduction <maximumf>, %163, %cst_91 [0] : vector<4x4xf32> to vector<4xf32>
    %165 = vector.extract_strided_slice %158 {offsets = [12, 0], sizes = [4, 4], strides = [1, 1]} : vector<16x4xf32> to vector<4x4xf32>
    %cst_92 = arith.constant dense<0xFF800000> : vector<4xf32>
    %166 = vector.multi_reduction <maximumf>, %165, %cst_92 [0] : vector<4x4xf32> to vector<4xf32>
    %167 = vector.extract_strided_slice %1 {offsets = [6, 12, 0, 0], sizes = [2, 4, 16, 4], strides = [1, 1, 1, 1]} : vector<8x16x16x4xf32> to vector<2x4x16x4xf32>
    %cst_93 = arith.constant dense<0xFF800000> : vector<2x16x4xf32>
    %168 = vector.multi_reduction <maximumf>, %167, %cst_93 [1] : vector<2x4x16x4xf32> to vector<2x16x4xf32>
    %cst_94 = arith.constant dense<0xFF800000> : vector<16x4xf32>
    %169 = vector.multi_reduction <maximumf>, %168, %cst_94 [0] : vector<2x16x4xf32> to vector<16x4xf32>
    %170 = vector.extract_strided_slice %169 {offsets = [0, 0], sizes = [4, 4], strides = [1, 1]} : vector<16x4xf32> to vector<4x4xf32>
    %cst_95 = arith.constant dense<0xFF800000> : vector<4xf32>
    %171 = vector.multi_reduction <maximumf>, %170, %cst_95 [0] : vector<4x4xf32> to vector<4xf32>
    %172 = vector.extract_strided_slice %169 {offsets = [4, 0], sizes = [4, 4], strides = [1, 1]} : vector<16x4xf32> to vector<4x4xf32>
    %cst_96 = arith.constant dense<0xFF800000> : vector<4xf32>
    %173 = vector.multi_reduction <maximumf>, %172, %cst_96 [0] : vector<4x4xf32> to vector<4xf32>
    %174 = vector.extract_strided_slice %169 {offsets = [8, 0], sizes = [4, 4], strides = [1, 1]} : vector<16x4xf32> to vector<4x4xf32>
    %cst_97 = arith.constant dense<0xFF800000> : vector<4xf32>
    %175 = vector.multi_reduction <maximumf>, %174, %cst_97 [0] : vector<4x4xf32> to vector<4xf32>
    %176 = vector.extract_strided_slice %169 {offsets = [12, 0], sizes = [4, 4], strides = [1, 1]} : vector<16x4xf32> to vector<4x4xf32>
    %cst_98 = arith.constant dense<0xFF800000> : vector<4xf32>
    %177 = vector.multi_reduction <maximumf>, %176, %cst_98 [0] : vector<4x4xf32> to vector<4xf32>
    %178 = arith.maximumf %6, %8 : vector<4xf32>
    %179 = arith.maximumf %178, %10 : vector<4xf32>
    %180 = arith.maximumf %179, %12 : vector<4xf32>
    %181 = arith.maximumf %180, %17 : vector<4xf32>
    %182 = arith.maximumf %181, %19 : vector<4xf32>
    %183 = arith.maximumf %182, %21 : vector<4xf32>
    %184 = arith.maximumf %183, %23 : vector<4xf32>
    %185 = arith.maximumf %184, %28 : vector<4xf32>
    %186 = arith.maximumf %185, %30 : vector<4xf32>
    %187 = arith.maximumf %186, %32 : vector<4xf32>
    %188 = arith.maximumf %187, %34 : vector<4xf32>
    %189 = arith.maximumf %188, %39 : vector<4xf32>
    %190 = arith.maximumf %189, %41 : vector<4xf32>
    %191 = arith.maximumf %190, %43 : vector<4xf32>
    %192 = arith.maximumf %191, %45 : vector<4xf32>
    %193 = arith.maximumf %192, %50 : vector<4xf32>
    %194 = arith.maximumf %193, %52 : vector<4xf32>
    %195 = arith.maximumf %194, %54 : vector<4xf32>
    %196 = arith.maximumf %195, %56 : vector<4xf32>
    %197 = arith.maximumf %196, %61 : vector<4xf32>
    %198 = arith.maximumf %197, %63 : vector<4xf32>
    %199 = arith.maximumf %198, %65 : vector<4xf32>
    %200 = arith.maximumf %199, %67 : vector<4xf32>
    %201 = arith.maximumf %200, %72 : vector<4xf32>
    %202 = arith.maximumf %201, %74 : vector<4xf32>
    %203 = arith.maximumf %202, %76 : vector<4xf32>
    %204 = arith.maximumf %203, %78 : vector<4xf32>
    %205 = arith.maximumf %204, %83 : vector<4xf32>
    %206 = arith.maximumf %205, %85 : vector<4xf32>
    %207 = arith.maximumf %206, %87 : vector<4xf32>
    %208 = arith.maximumf %207, %89 : vector<4xf32>
    %209 = arith.maximumf %208, %94 : vector<4xf32>
    %210 = arith.maximumf %209, %96 : vector<4xf32>
    %211 = arith.maximumf %210, %98 : vector<4xf32>
    %212 = arith.maximumf %211, %100 : vector<4xf32>
    %213 = arith.maximumf %212, %105 : vector<4xf32>
    %214 = arith.maximumf %213, %107 : vector<4xf32>
    %215 = arith.maximumf %214, %109 : vector<4xf32>
    %216 = arith.maximumf %215, %111 : vector<4xf32>
    %217 = arith.maximumf %216, %116 : vector<4xf32>
    %218 = arith.maximumf %217, %118 : vector<4xf32>
    %219 = arith.maximumf %218, %120 : vector<4xf32>
    %220 = arith.maximumf %219, %122 : vector<4xf32>
    %221 = arith.maximumf %220, %127 : vector<4xf32>
    %222 = arith.maximumf %221, %129 : vector<4xf32>
    %223 = arith.maximumf %222, %131 : vector<4xf32>
    %224 = arith.maximumf %223, %133 : vector<4xf32>
    %225 = arith.maximumf %224, %138 : vector<4xf32>
    %226 = arith.maximumf %225, %140 : vector<4xf32>
    %227 = arith.maximumf %226, %142 : vector<4xf32>
    %228 = arith.maximumf %227, %144 : vector<4xf32>
    %229 = arith.maximumf %228, %149 : vector<4xf32>
    %230 = arith.maximumf %229, %151 : vector<4xf32>
    %231 = arith.maximumf %230, %153 : vector<4xf32>
    %232 = arith.maximumf %231, %155 : vector<4xf32>
    %233 = arith.maximumf %232, %160 : vector<4xf32>
    %234 = arith.maximumf %233, %162 : vector<4xf32>
    %235 = arith.maximumf %234, %164 : vector<4xf32>
    %236 = arith.maximumf %235, %166 : vector<4xf32>
    %237 = arith.maximumf %236, %171 : vector<4xf32>
    %238 = arith.maximumf %237, %173 : vector<4xf32>
    %239 = arith.maximumf %238, %175 : vector<4xf32>
    %240 = arith.maximumf %239, %177 : vector<4xf32>
    %cst_99 = arith.constant 1.000000e+00 : f32
    %241 = vector.broadcast %cst_99 : f32 to vector<4xf32>
    %242 = arith.mulf %240, %241 : vector<4xf32>
    %243 = arith.maximumf %6, %8 : vector<4xf32>
    %244 = arith.maximumf %243, %17 : vector<4xf32>
    %245 = arith.maximumf %244, %19 : vector<4xf32>
    %246 = arith.maximumf %245, %50 : vector<4xf32>
    %247 = arith.maximumf %246, %52 : vector<4xf32>
    %248 = arith.maximumf %247, %61 : vector<4xf32>
    %249 = arith.maximumf %248, %63 : vector<4xf32>
    %250 = arith.maximumf %10, %12 : vector<4xf32>
    %251 = arith.maximumf %250, %21 : vector<4xf32>
    %252 = arith.maximumf %251, %23 : vector<4xf32>
    %253 = arith.maximumf %252, %54 : vector<4xf32>
    %254 = arith.maximumf %253, %56 : vector<4xf32>
    %255 = arith.maximumf %254, %65 : vector<4xf32>
    %256 = arith.maximumf %255, %67 : vector<4xf32>
    %257 = arith.addf %249, %256 : vector<4xf32>
    %258 = arith.maximumf %28, %30 : vector<4xf32>
    %259 = arith.maximumf %258, %39 : vector<4xf32>
    %260 = arith.maximumf %259, %41 : vector<4xf32>
    %261 = arith.maximumf %260, %72 : vector<4xf32>
    %262 = arith.maximumf %261, %74 : vector<4xf32>
    %263 = arith.maximumf %262, %83 : vector<4xf32>
    %264 = arith.maximumf %263, %85 : vector<4xf32>
    %265 = arith.addf %257, %264 : vector<4xf32>
    %266 = arith.maximumf %32, %34 : vector<4xf32>
    %267 = arith.maximumf %266, %43 : vector<4xf32>
    %268 = arith.maximumf %267, %45 : vector<4xf32>
    %269 = arith.maximumf %268, %76 : vector<4xf32>
    %270 = arith.maximumf %269, %78 : vector<4xf32>
    %271 = arith.maximumf %270, %87 : vector<4xf32>
    %272 = arith.maximumf %271, %89 : vector<4xf32>
    %273 = arith.addf %265, %272 : vector<4xf32>
    %cst_100 = arith.constant 2.500000e-01 : f32
    %274 = vector.broadcast %cst_100 : f32 to vector<4xf32>
    %275 = arith.mulf %273, %274 : vector<4xf32>
    %276 = arith.maximumf %94, %96 : vector<4xf32>
    %277 = arith.maximumf %276, %105 : vector<4xf32>
    %278 = arith.maximumf %277, %107 : vector<4xf32>
    %279 = arith.maximumf %278, %138 : vector<4xf32>
    %280 = arith.maximumf %279, %140 : vector<4xf32>
    %281 = arith.maximumf %280, %149 : vector<4xf32>
    %282 = arith.maximumf %281, %151 : vector<4xf32>
    %283 = arith.maximumf %98, %100 : vector<4xf32>
    %284 = arith.maximumf %283, %109 : vector<4xf32>
    %285 = arith.maximumf %284, %111 : vector<4xf32>
    %286 = arith.maximumf %285, %142 : vector<4xf32>
    %287 = arith.maximumf %286, %144 : vector<4xf32>
    %288 = arith.maximumf %287, %153 : vector<4xf32>
    %289 = arith.maximumf %288, %155 : vector<4xf32>
    %290 = arith.addf %282, %289 : vector<4xf32>
    %291 = arith.maximumf %116, %118 : vector<4xf32>
    %292 = arith.maximumf %291, %127 : vector<4xf32>
    %293 = arith.maximumf %292, %129 : vector<4xf32>
    %294 = arith.maximumf %293, %160 : vector<4xf32>
    %295 = arith.maximumf %294, %162 : vector<4xf32>
    %296 = arith.maximumf %295, %171 : vector<4xf32>
    %297 = arith.maximumf %296, %173 : vector<4xf32>
    %298 = arith.addf %290, %297 : vector<4xf32>
    %299 = arith.maximumf %120, %122 : vector<4xf32>
    %300 = arith.maximumf %299, %131 : vector<4xf32>
    %301 = arith.maximumf %300, %133 : vector<4xf32>
    %302 = arith.maximumf %301, %164 : vector<4xf32>
    %303 = arith.maximumf %302, %166 : vector<4xf32>
    %304 = arith.maximumf %303, %175 : vector<4xf32>
    %305 = arith.maximumf %304, %177 : vector<4xf32>
    %306 = arith.addf %298, %305 : vector<4xf32>
    %cst_101 = arith.constant 2.500000e-01 : f32
    %307 = vector.broadcast %cst_101 : f32 to vector<4xf32>
    %308 = arith.mulf %306, %307 : vector<4xf32>
    %309 = arith.addf %6, %8 : vector<4xf32>
    %310 = arith.addf %309, %10 : vector<4xf32>
    %311 = arith.addf %310, %12 : vector<4xf32>
    %312 = arith.addf %311, %17 : vector<4xf32>
    %313 = arith.addf %312, %19 : vector<4xf32>
    %314 = arith.addf %313, %21 : vector<4xf32>
    %315 = arith.addf %314, %23 : vector<4xf32>
    %316 = arith.addf %315, %28 : vector<4xf32>
    %317 = arith.addf %316, %30 : vector<4xf32>
    %318 = arith.addf %317, %32 : vector<4xf32>
    %319 = arith.addf %318, %34 : vector<4xf32>
    %320 = arith.addf %319, %39 : vector<4xf32>
    %321 = arith.addf %320, %41 : vector<4xf32>
    %322 = arith.addf %321, %43 : vector<4xf32>
    %323 = arith.addf %322, %45 : vector<4xf32>
    %cst_102 = arith.constant 6.250000e-02 : f32
    %324 = vector.broadcast %cst_102 : f32 to vector<4xf32>
    %325 = arith.mulf %323, %324 : vector<4xf32>
    %326 = arith.addf %50, %52 : vector<4xf32>
    %327 = arith.addf %326, %54 : vector<4xf32>
    %328 = arith.addf %327, %56 : vector<4xf32>
    %329 = arith.addf %328, %61 : vector<4xf32>
    %330 = arith.addf %329, %63 : vector<4xf32>
    %331 = arith.addf %330, %65 : vector<4xf32>
    %332 = arith.addf %331, %67 : vector<4xf32>
    %333 = arith.addf %332, %72 : vector<4xf32>
    %334 = arith.addf %333, %74 : vector<4xf32>
    %335 = arith.addf %334, %76 : vector<4xf32>
    %336 = arith.addf %335, %78 : vector<4xf32>
    %337 = arith.addf %336, %83 : vector<4xf32>
    %338 = arith.addf %337, %85 : vector<4xf32>
    %339 = arith.addf %338, %87 : vector<4xf32>
    %340 = arith.addf %339, %89 : vector<4xf32>
    %cst_103 = arith.constant 6.250000e-02 : f32
    %341 = vector.broadcast %cst_103 : f32 to vector<4xf32>
    %342 = arith.mulf %340, %341 : vector<4xf32>
    %343 = arith.addf %94, %96 : vector<4xf32>
    %344 = arith.addf %343, %98 : vector<4xf32>
    %345 = arith.addf %344, %100 : vector<4xf32>
    %346 = arith.addf %345, %105 : vector<4xf32>
    %347 = arith.addf %346, %107 : vector<4xf32>
    %348 = arith.addf %347, %109 : vector<4xf32>
    %349 = arith.addf %348, %111 : vector<4xf32>
    %350 = arith.addf %349, %116 : vector<4xf32>
    %351 = arith.addf %350, %118 : vector<4xf32>
    %352 = arith.addf %351, %120 : vector<4xf32>
    %353 = arith.addf %352, %122 : vector<4xf32>
    %354 = arith.addf %353, %127 : vector<4xf32>
    %355 = arith.addf %354, %129 : vector<4xf32>
    %356 = arith.addf %355, %131 : vector<4xf32>
    %357 = arith.addf %356, %133 : vector<4xf32>
    %cst_104 = arith.constant 6.250000e-02 : f32
    %358 = vector.broadcast %cst_104 : f32 to vector<4xf32>
    %359 = arith.mulf %357, %358 : vector<4xf32>
    %360 = arith.addf %138, %140 : vector<4xf32>
    %361 = arith.addf %360, %142 : vector<4xf32>
    %362 = arith.addf %361, %144 : vector<4xf32>
    %363 = arith.addf %362, %149 : vector<4xf32>
    %364 = arith.addf %363, %151 : vector<4xf32>
    %365 = arith.addf %364, %153 : vector<4xf32>
    %366 = arith.addf %365, %155 : vector<4xf32>
    %367 = arith.addf %366, %160 : vector<4xf32>
    %368 = arith.addf %367, %162 : vector<4xf32>
    %369 = arith.addf %368, %164 : vector<4xf32>
    %370 = arith.addf %369, %166 : vector<4xf32>
    %371 = arith.addf %370, %171 : vector<4xf32>
    %372 = arith.addf %371, %173 : vector<4xf32>
    %373 = arith.addf %372, %175 : vector<4xf32>
    %374 = arith.addf %373, %177 : vector<4xf32>
    %cst_105 = arith.constant 6.250000e-02 : f32
    %375 = vector.broadcast %cst_105 : f32 to vector<4xf32>
    %376 = arith.mulf %374, %375 : vector<4xf32>
    %377 = vector.shape_cast %242 : vector<4xf32> to vector<1x4xf32>
    %378 = vector.shape_cast %275 : vector<4xf32> to vector<1x4xf32>
    %379 = vector.shape_cast %308 : vector<4xf32> to vector<1x4xf32>
    %380 = vector.shape_cast %325 : vector<4xf32> to vector<1x4xf32>
    %381 = vector.shape_cast %342 : vector<4xf32> to vector<1x4xf32>
    %382 = vector.shape_cast %359 : vector<4xf32> to vector<1x4xf32>
    %383 = vector.shape_cast %376 : vector<4xf32> to vector<1x4xf32>
    %384 = tpu.concatenate %377, %378, %379, %380, %381, %382, %383 in 0 : vector<1x4xf32>, vector<1x4xf32>, vector<1x4xf32>, vector<1x4xf32>, vector<1x4xf32>, vector<1x4xf32>, vector<1x4xf32> -> vector<7x4xf32>
    %c0_106 = arith.constant 0 : index
    %c0_107 = arith.constant 0 : index
    %c0_108 = arith.constant 0 : index
    %385 = vector.load %arg3[%c0_106, %c0_107, %c0_108] : memref<1x7x4xf32, #tpu.memory_space<vmem>>, vector<1x7x4xf32>
    %386 = vector.shape_cast %385 : vector<1x7x4xf32> to vector<7x4xf32>
    %387 = vector.shape_cast %384 : vector<7x4xf32> to vector<1x7x4xf32>
    tpu.vector_store %arg3[%c0_106, %c0_107, %c0_108], %387 {strides = array<i32>} : memref<1x7x4xf32, #tpu.memory_space<vmem>>, vector<1x7x4xf32>,
    return
  }
  func.func @transform_0(%arg0: i32, %arg1: i32) -> (i32, i32, i32, i32, i32) {
    %c0_i32 = arith.constant 0 : i32
    %c0_i32_0 = arith.constant 0 : i32
    %c0_i32_1 = arith.constant 0 : i32
    %c0_i32_2 = arith.constant 0 : i32
    return %arg0, %c0_i32, %c0_i32_0, %c0_i32_1, %arg1 : i32, i32, i32, i32, i32
  }
  func.func @transform_1(%arg0: i32, %arg1: i32) -> (i32, i32, i32) {
    %c0_i32 = arith.constant 0 : i32
    %c0_i32_0 = arith.constant 0 : i32
    return %arg0, %c0_i32, %arg1 : i32, i32, i32
  }
}

</mosaic_0001>

<llo_original>
// kernel: tpu_custom_call.1
$region0: #{tpu_custom_call.1}
  #allocation0 [shape = 'u32[]', space=smem, size = 0x4, offset = 0x4, fixed_abs, tag = 'smem constant byte address 0x4 - core index']
  #allocation1 [shape = 'u32[72,128]{1,0:T(1,128)}', space=vmem, size = 0x9000, scoped, tag = 'internal scratch']
  %s0 = inlined_call_operand.vmem [shape: f32[2,8,16,16,4], index: 0, kind: input, shape index: {}]
  %s1 = inlined_call_operand.vmem [shape: f32[2,7,4], index: 1, kind: output, shape index: {}]
  %s2 = sld [smem:[#allocation0]]
  $region37: #{tpu_custom_call.1} parent=0
    _
  %s4 = ssub.s32 1, %s2
  %s5 = scalar_select 0, %s4, %s2
  loop: start=0, step=1, limit=4
  $region2: #{tpu_custom_call.1} parent=0 // loop_pre_header
    _
  $region3: #{tpu_custom_call.1} parent=0 // loop_header
    %s7 = sphi 0, %s11
    %p8 = scmp.ge.s32.totalorder %s7, 4
    %s14 = sphi 0, %s26
    %s15 = sphi 0, %s22
    %s16 = sphi 0, %s14
    %s17 = sphi 0, %s15
    %s18 = sphi 0, %s16
    %s19 = sphi 0, %s17
    %s31 = sphi 0, %s33
    %s34 = sphi 0, %s31
    %s35 = sphi 0, %s34
    %s51 = sphi 0, %s35
    %s59 = sphi 0, %s61
    %s62 = sphi 0, %s59
    %s63 = sphi 0, %s62
    %s79 = sphi 0, %s63
  $region4: #{tpu_custom_call.1} parent=0 // loop_header_branch
    %10 = sbr.rel (%p8) target = $region8
  $region5: #{tpu_custom_call.1} parent=0 // loop_body
    %s12 = ssub.s32 %s7, 1
    %s13 = ssub.s32 %s7, 2
    %s20 = sadd.s32 1, %s15
    %p21 = scmp.ge.s32.totalorder %s20, 1
    %s22 = scalar_select %p21, 0, %s20
    %s23 = sadd.s32 1, %s14
    %s24 = scalar_select %p21, %s23, %s14
    %p25 = scmp.ge.s32.totalorder %s24, 2
    %s26 = scalar_select %p25, 0, %s24
    %s27 = ssub.s32 %s14, %s26
    %s28 = ssub.s32 %s15, %s22
    %s29 = sor.u32 %s27, %s28
    %p30 = scmp.eq.s32.totalorder %s29, 0
    %s32 = sadd.s32 %s31, 1
    %s33 = scalar_select %p30, %s31, %s32
    %p36 = pneg %p30
    %p37 = scmp.eq.s32.totalorder %s7, 1
    %p38 = por %p36, %p37
    %p39 = scmp.ne.s32.totalorder %s31, %s34
    %p40 = scmp.eq.s32.totalorder %s7, 0
    %p41 = por %p39, %p40
    %p42 = scmp.ne.s32.totalorder %s31, %s34
    %p43 = scmp.eq.s32.totalorder %s12, 1
    %p44 = por %p42, %p43
    %p45 = scmp.ne.s32.totalorder %s34, %s35
    %p46 = scmp.eq.s32.totalorder %s12, 0
    %p47 = por %p45, %p46
    %p48 = scmp.ne.s32.totalorder %s34, %s35
    %p49 = scmp.eq.s32.totalorder %s13, 1
    %p50 = por %p48, %p49
    %p52 = scmp.ne.s32.totalorder %s35, %s51
    %p53 = scmp.eq.s32.totalorder %s13, 0
    %p54 = por %p52, %p53
    %s55 = ssub.s32 %s14, %s26
    %s56 = ssub.s32 %s15, %s22
    %s57 = sor.u32 %s55, %s56
    %p58 = scmp.eq.s32.totalorder %s57, 0
    %s60 = sadd.s32 %s59, 1
    %s61 = scalar_select %p58, %s59, %s60
    %p64 = pneg %p58
    %p65 = scmp.eq.s32.totalorder %s7, 1
    %p66 = por %p64, %p65
    %p67 = scmp.ne.s32.totalorder %s59, %s62
    %p68 = scmp.eq.s32.totalorder %s7, 0
    %p69 = por %p67, %p68
    %p70 = scmp.ne.s32.totalorder %s59, %s62
    %p71 = scmp.eq.s32.totalorder %s12, 1
    %p72 = por %p70, %p71
    %p73 = scmp.ne.s32.totalorder %s62, %s63
    %p74 = scmp.eq.s32.totalorder %s12, 0
    %p75 = por %p73, %p74
    %p76 = scmp.ne.s32.totalorder %s62, %s63
    %p77 = scmp.eq.s32.totalorder %s13, 1
    %p78 = por %p76, %p77
    %p80 = scmp.ne.s32.totalorder %s63, %s79
    %p81 = scmp.eq.s32.totalorder %s13, 0
    %p82 = por %p80, %p81
    %p83 = scmp.le.s32.totalorder 1, %s7
    %p84 = scmp.lt.s32.totalorder %s7, 3
    %p85 = pnand %p83, %p84
    %p86 = pneg %p85
    // Predicated region
    $region9: #{tpu_custom_call.1} parent=5 // pred_check
      _
    $region10: #{tpu_custom_call.1} parent=5 // pred_check_branch
      %88 = sbr.rel (%p85) target = $region12
    $region11: #{tpu_custom_call.1} parent=5 // pred_region
      %s89 = ssub.s32 %s7, 1
    $region12: #{tpu_custom_call.1} parent=5 // pred_fallthru
      _
    %p90 = scmp.lt.s32.totalorder %s7, 2
    // Predicated region
    $region13: #{tpu_custom_call.1} parent=5 // pred_check
      %p91 = pneg %p90
    $region14: #{tpu_custom_call.1} parent=5 // pred_check_branch
      %93 = sbr.rel (%p91) target = $region16
    $region15: #{tpu_custom_call.1} parent=5 // pred_region
      // Predicated region
      $region17: #{tpu_custom_call.1} parent=15 // pred_check
        %p94 = pneg %p41
      $region18: #{tpu_custom_call.1} parent=15 // pred_check_branch
        %96 = sbr.rel (%p94) target = $region20
      $region19: #{tpu_custom_call.1} parent=15 // pred_region
        %p97 = scmp.lt.s32.totalorder %s14, 1
        %s98 = scalar_select %p97, %s14, 1
        %p99 = scmp.lt.s32.totalorder %s15, 0
        %s100 = scalar_select %p99, %s15, 0
        %s101 = smul.addr %s98, 256
        %s102 = sadd.s32 %s100, %s101
        %s103 = smul.addr %s102, 8
        %s104 = scalar_lea.vmem %s0, %s103
      $region20: #{tpu_custom_call.1} parent=15 // pred_fallthru
        _
    $region16: #{tpu_custom_call.1} parent=5 // pred_fallthru
      _
    %p105 = scmp.le.s32.totalorder 1, %s7
    %p106 = scmp.lt.s32.totalorder %s7, 3
    %p107 = pnand %p105, %p106
    %p108 = pneg %p107
    // Predicated region
    $region21: #{tpu_custom_call.1} parent=5 // pred_check
      _
    $region22: #{tpu_custom_call.1} parent=5 // pred_check_branch
      %110 = sbr.rel (%p107) target = $region24
    $region23: #{tpu_custom_call.1} parent=5 // pred_region
      %s111 = ssub.s32 %s7, 1
      %p112 = scmp.lt.s32.totalorder %s16, 1
      %s113 = scalar_select %p112, %s16, 1
      %p114 = scmp.lt.s32.totalorder %s17, 0
      %s115 = scalar_select %p114, %s17, 0
      %s116 = smul.addr %s113, 256
      %s117 = sadd.s32 %s115, %s116
      %s118 = smul.addr %s117, 8
      %s119 = scalar_lea.vmem %s0, %s118
      %p120 = pneg %p47
      %p121 = pneg %p44
      %p122 = pneg %p75
      %p123 = pneg %p72
      %p124 = scmp.lt.s32.totalorder %s16, 1
      %s125 = scalar_select %p124, %s16, 1
      %p126 = scmp.lt.s32.totalorder %s17, 0
      %s127 = scalar_select %p126, %s17, 0
      %s128 = sadd.s32 %s127, %s125
      %s129 = smul.addr %s128, 8
      %s130 = scalar_lea.vmem %s1, %s129
      %p131 = scmp.lt.s32.totalorder %s16, 1
      %s132 = scalar_select %p131, %s16, 1
      %p133 = scmp.lt.s32.totalorder %s17, 0
      %s134 = scalar_select %p133, %s17, 0
      %s135 = smul.addr %s132, 256
      %s136 = sadd.s32 %s134, %s135
      %s137 = smul.addr %s136, 8
      %s138 = scalar_lea.vmem %s0, %s137
      %p139 = scmp.lt.s32.totalorder %s16, 1
      %s140 = scalar_select %p139, %s16, 1
      %p141 = scmp.lt.s32.totalorder %s17, 0
      %s142 = scalar_select %p141, %s17, 0
      %s143 = sadd.s32 %s142, %s140
      %s144 = smul.addr %s143, 8
      %s145 = scalar_lea.vmem %s1, %s144
      %v146 = vld [vmem:[%s138] sm:$0xff]
      %v147 = vld [vmem:[%s138 + $0x8] sm:$0xff]
      %v148 = vld [vmem:[%s138 + $0x10] sm:$0xff]
      %v149 = vld [vmem:[%s138 + $0x18] sm:$0xff]
      %v150 = vld [vmem:[%s138 + $0x20] sm:$0xff]
      %v151 = vld [vmem:[%s138 + $0x28] sm:$0xff]
      %v152 = vld [vmem:[%s138 + $0x30] sm:$0xff]
      %v153 = vld [vmem:[%s138 + $0x38] sm:$0xff]
      %v154 = vld [vmem:[%s138 + $0x40] sm:$0xff]
      %v155 = vld [vmem:[%s138 + $0x48] sm:$0xff]
      %v156 = vld [vmem:[%s138 + $0x50] sm:$0xff]
      %v157 = vld [vmem:[%s138 + $0x58] sm:$0xff]
      %v158 = vld [vmem:[%s138 + $0x60] sm:$0xff]
      %v159 = vld [vmem:[%s138 + $0x68] sm:$0xff]
      %v160 = vld [vmem:[%s138 + $0x70] sm:$0xff]
      %v161 = vld [vmem:[%s138 + $0x78] sm:$0xff]
      %v162 = vld [vmem:[%s138 + $0x80] sm:$0xff]
      %v163 = vld [vmem:[%s138 + $0x88] sm:$0xff]
      %v164 = vld [vmem:[%s138 + $0x90] sm:$0xff]
      %v165 = vld [vmem:[%s138 + $0x98] sm:$0xff]
      %v166 = vld [vmem:[%s138 + $0xa0] sm:$0xff]
      %v167 = vld [vmem:[%s138 + $0xa8] sm:$0xff]
      %v168 = vld [vmem:[%s138 + $0xb0] sm:$0xff]
      %v169 = vld [vmem:[%s138 + $0xb8] sm:$0xff]
      %v170 = vld [vmem:[%s138 + $0xc0] sm:$0xff]
      %v171 = vld [vmem:[%s138 + $0xc8] sm:$0xff]
      %v172 = vld [vmem:[%s138 + $0xd0] sm:$0xff]
      %v173 = vld [vmem:[%s138 + $0xd8] sm:$0xff]
      %v174 = vld [vmem:[%s138 + $0xe0] sm:$0xff]
      %v175 = vld [vmem:[%s138 + $0xe8] sm:$0xff]
      %v176 = vld [vmem:[%s138 + $0xf0] sm:$0xff]
      %v177 = vld [vmem:[%s138 + $0xf8] sm:$0xff]
      %v178 = vld [vmem:[%s138 + $0x100] sm:$0xff]
      %v179 = vld [vmem:[%s138 + $0x108] sm:$0xff]
      %v180 = vld [vmem:[%s138 + $0x110] sm:$0xff]
      %v181 = vld [vmem:[%s138 + $0x118] sm:$0xff]
      %v182 = vld [vmem:[%s138 + $0x120] sm:$0xff]
      %v183 = vld [vmem:[%s138 + $0x128] sm:$0xff]
      %v184 = vld [vmem:[%s138 + $0x130] sm:$0xff]
      %v185 = vld [vmem:[%s138 + $0x138] sm:$0xff]
      %v186 = vld [vmem:[%s138 + $0x140] sm:$0xff]
      %v187 = vld [vmem:[%s138 + $0x148] sm:$0xff]
      %v188 = vld [vmem:[%s138 + $0x150] sm:$0xff]
      %v189 = vld [vmem:[%s138 + $0x158] sm:$0xff]
      %v190 = vld [vmem:[%s138 + $0x160] sm:$0xff]
      %v191 = vld [vmem:[%s138 + $0x168] sm:$0xff]
      %v192 = vld [vmem:[%s138 + $0x170] sm:$0xff]
      %v193 = vld [vmem:[%s138 + $0x178] sm:$0xff]
      %v194 = vld [vmem:[%s138 + $0x180] sm:$0xff]
      %v195 = vld [vmem:[%s138 + $0x188] sm:$0xff]
      %v196 = vld [vmem:[%s138 + $0x190] sm:$0xff]
      %v197 = vld [vmem:[%s138 + $0x198] sm:$0xff]
      %v198 = vld [vmem:[%s138 + $0x1a0] sm:$0xff]
      %v199 = vld [vmem:[%s138 + $0x1a8] sm:$0xff]
      %v200 = vld [vmem:[%s138 + $0x1b0] sm:$0xff]
      %v201 = vld [vmem:[%s138 + $0x1b8] sm:$0xff]
      %v202 = vld [vmem:[%s138 + $0x1c0] sm:$0xff]
      %v203 = vld [vmem:[%s138 + $0x1c8] sm:$0xff]
      %v204 = vld [vmem:[%s138 + $0x1d0] sm:$0xff]
      %v205 = vld [vmem:[%s138 + $0x1d8] sm:$0xff]
      %v206 = vld [vmem:[%s138 + $0x1e0] sm:$0xff]
      %v207 = vld [vmem:[%s138 + $0x1e8] sm:$0xff]
      %v208 = vld [vmem:[%s138 + $0x1f0] sm:$0xff]
      %v209 = vld [vmem:[%s138 + $0x1f8] sm:$0xff]
      %v210 = vld [vmem:[%s138 + $0x200] sm:$0xff]
      %v211 = vld [vmem:[%s138 + $0x208] sm:$0xff]
      %v212 = vld [vmem:[%s138 + $0x210] sm:$0xff]
      %v213 = vld [vmem:[%s138 + $0x218] sm:$0xff]
      %v214 = vld [vmem:[%s138 + $0x220] sm:$0xff]
      %v215 = vld [vmem:[%s138 + $0x228] sm:$0xff]
      %v216 = vld [vmem:[%s138 + $0x230] sm:$0xff]
      %v217 = vld [vmem:[%s138 + $0x238] sm:$0xff]
      %v218 = vld [vmem:[%s138 + $0x240] sm:$0xff]
      %v219 = vld [vmem:[%s138 + $0x248] sm:$0xff]
      %v220 = vld [vmem:[%s138 + $0x250] sm:$0xff]
      %v221 = vld [vmem:[%s138 + $0x258] sm:$0xff]
      %v222 = vld [vmem:[%s138 + $0x260] sm:$0xff]
      %v223 = vld [vmem:[%s138 + $0x268] sm:$0xff]
      %v224 = vld [vmem:[%s138 + $0x270] sm:$0xff]
      %v225 = vld [vmem:[%s138 + $0x278] sm:$0xff]
      %v226 = vld [vmem:[%s138 + $0x280] sm:$0xff]
      %v227 = vld [vmem:[%s138 + $0x288] sm:$0xff]
      %v228 = vld [vmem:[%s138 + $0x290] sm:$0xff]
      %v229 = vld [vmem:[%s138 + $0x298] sm:$0xff]
      %v230 = vld [vmem:[%s138 + $0x2a0] sm:$0xff]
      %v231 = vld [vmem:[%s138 + $0x2a8] sm:$0xff]
      %v232 = vld [vmem:[%s138 + $0x2b0] sm:$0xff]
      %v233 = vld [vmem:[%s138 + $0x2b8] sm:$0xff]
      %v234 = vld [vmem:[%s138 + $0x2c0] sm:$0xff]
      %v235 = vld [vmem:[%s138 + $0x2c8] sm:$0xff]
      %v236 = vld [vmem:[%s138 + $0x2d0] sm:$0xff]
      %v237 = vld [vmem:[%s138 + $0x2d8] sm:$0xff]
      %v238 = vld [vmem:[%s138 + $0x2e0] sm:$0xff]
      %v239 = vld [vmem:[%s138 + $0x2e8] sm:$0xff]
      %v240 = vld [vmem:[%s138 + $0x2f0] sm:$0xff]
      %v241 = vld [vmem:[%s138 + $0x2f8] sm:$0xff]
      %v242 = vld [vmem:[%s138 + $0x300] sm:$0xff]
      %v243 = vld [vmem:[%s138 + $0x308] sm:$0xff]
      %v244 = vld [vmem:[%s138 + $0x310] sm:$0xff]
      %v245 = vld [vmem:[%s138 + $0x318] sm:$0xff]
      %v246 = vld [vmem:[%s138 + $0x320] sm:$0xff]
      %v247 = vld [vmem:[%s138 + $0x328] sm:$0xff]
      %v248 = vld [vmem:[%s138 + $0x330] sm:$0xff]
      %v249 = vld [vmem:[%s138 + $0x338] sm:$0xff]
      %v250 = vld [vmem:[%s138 + $0x340] sm:$0xff]
      %v251 = vld [vmem:[%s138 + $0x348] sm:$0xff]
      %v252 = vld [vmem:[%s138 + $0x350] sm:$0xff]
      %v253 = vld [vmem:[%s138 + $0x358] sm:$0xff]
      %v254 = vld [vmem:[%s138 + $0x360] sm:$0xff]
      %v255 = vld [vmem:[%s138 + $0x368] sm:$0xff]
      %v256 = vld [vmem:[%s138 + $0x370] sm:$0xff]
      %v257 = vld [vmem:[%s138 + $0x378] sm:$0xff]
      %v258 = vld [vmem:[%s138 + $0x380] sm:$0xff]
      %v259 = vld [vmem:[%s138 + $0x388] sm:$0xff]
      %v260 = vld [vmem:[%s138 + $0x390] sm:$0xff]
      %v261 = vld [vmem:[%s138 + $0x398] sm:$0xff]
      %v262 = vld [vmem:[%s138 + $0x3a0] sm:$0xff]
      %v263 = vld [vmem:[%s138 + $0x3a8] sm:$0xff]
      %v264 = vld [vmem:[%s138 + $0x3b0] sm:$0xff]
      %v265 = vld [vmem:[%s138 + $0x3b8] sm:$0xff]
      %v266 = vld [vmem:[%s138 + $0x3c0] sm:$0xff]
      %v267 = vld [vmem:[%s138 + $0x3c8] sm:$0xff]
      %v268 = vld [vmem:[%s138 + $0x3d0] sm:$0xff]
      %v269 = vld [vmem:[%s138 + $0x3d8] sm:$0xff]
      %v270 = vld [vmem:[%s138 + $0x3e0] sm:$0xff]
      %v271 = vld [vmem:[%s138 + $0x3e8] sm:$0xff]
      %v272 = vld [vmem:[%s138 + $0x3f0] sm:$0xff]
      %v273 = vld [vmem:[%s138 + $0x3f8] sm:$0xff]
      %v274 = vld [vmem:[%s138 + $0x400] sm:$0xff]
      %v275 = vld [vmem:[%s138 + $0x408] sm:$0xff]
      %v276 = vld [vmem:[%s138 + $0x410] sm:$0xff]
      %v277 = vld [vmem:[%s138 + $0x418] sm:$0xff]
      %v278 = vld [vmem:[%s138 + $0x420] sm:$0xff]
      %v279 = vld [vmem:[%s138 + $0x428] sm:$0xff]
      %v280 = vld [vmem:[%s138 + $0x430] sm:$0xff]
      %v281 = vld [vmem:[%s138 + $0x438] sm:$0xff]
      %v282 = vld [vmem:[%s138 + $0x440] sm:$0xff]
      %v283 = vld [vmem:[%s138 + $0x448] sm:$0xff]
      %v284 = vld [vmem:[%s138 + $0x450] sm:$0xff]
      %v285 = vld [vmem:[%s138 + $0x458] sm:$0xff]
      %v286 = vld [vmem:[%s138 + $0x460] sm:$0xff]
      %v287 = vld [vmem:[%s138 + $0x468] sm:$0xff]
      %v288 = vld [vmem:[%s138 + $0x470] sm:$0xff]
      %v289 = vld [vmem:[%s138 + $0x478] sm:$0xff]
      %v290 = vld [vmem:[%s138 + $0x480] sm:$0xff]
      %v291 = vld [vmem:[%s138 + $0x488] sm:$0xff]
      %v292 = vld [vmem:[%s138 + $0x490] sm:$0xff]
      %v293 = vld [vmem:[%s138 + $0x498] sm:$0xff]
      %v294 = vld [vmem:[%s138 + $0x4a0] sm:$0xff]
      %v295 = vld [vmem:[%s138 + $0x4a8] sm:$0xff]
      %v296 = vld [vmem:[%s138 + $0x4b0] sm:$0xff]
      %v297 = vld [vmem:[%s138 + $0x4b8] sm:$0xff]
      %v298 = vld [vmem:[%s138 + $0x4c0] sm:$0xff]
      %v299 = vld [vmem:[%s138 + $0x4c8] sm:$0xff]
      %v300 = vld [vmem:[%s138 + $0x4d0] sm:$0xff]
      %v301 = vld [vmem:[%s138 + $0x4d8] sm:$0xff]
      %v302 = vld [vmem:[%s138 + $0x4e0] sm:$0xff]
      %v303 = vld [vmem:[%s138 + $0x4e8] sm:$0xff]
      %v304 = vld [vmem:[%s138 + $0x4f0] sm:$0xff]
      %v305 = vld [vmem:[%s138 + $0x4f8] sm:$0xff]
      %v306 = vld [vmem:[%s138 + $0x500] sm:$0xff]
      %v307 = vld [vmem:[%s138 + $0x508] sm:$0xff]
      %v308 = vld [vmem:[%s138 + $0x510] sm:$0xff]
      %v309 = vld [vmem:[%s138 + $0x518] sm:$0xff]
      %v310 = vld [vmem:[%s138 + $0x520] sm:$0xff]
      %v311 = vld [vmem:[%s138 + $0x528] sm:$0xff]
      %v312 = vld [vmem:[%s138 + $0x530] sm:$0xff]
      %v313 = vld [vmem:[%s138 + $0x538] sm:$0xff]
      %v314 = vld [vmem:[%s138 + $0x540] sm:$0xff]
      %v315 = vld [vmem:[%s138 + $0x548] sm:$0xff]
      %v316 = vld [vmem:[%s138 + $0x550] sm:$0xff]
      %v317 = vld [vmem:[%s138 + $0x558] sm:$0xff]
      %v318 = vld [vmem:[%s138 + $0x560] sm:$0xff]
      %v319 = vld [vmem:[%s138 + $0x568] sm:$0xff]
      %v320 = vld [vmem:[%s138 + $0x570] sm:$0xff]
      %v321 = vld [vmem:[%s138 + $0x578] sm:$0xff]
      %v322 = vld [vmem:[%s138 + $0x580] sm:$0xff]
      %v323 = vld [vmem:[%s138 + $0x588] sm:$0xff]
      %v324 = vld [vmem:[%s138 + $0x590] sm:$0xff]
      %v325 = vld [vmem:[%s138 + $0x598] sm:$0xff]
      %v326 = vld [vmem:[%s138 + $0x5a0] sm:$0xff]
      %v327 = vld [vmem:[%s138 + $0x5a8] sm:$0xff]
      %v328 = vld [vmem:[%s138 + $0x5b0] sm:$0xff]
      %v329 = vld [vmem:[%s138 + $0x5b8] sm:$0xff]
      %v330 = vld [vmem:[%s138 + $0x5c0] sm:$0xff]
      %v331 = vld [vmem:[%s138 + $0x5c8] sm:$0xff]
      %v332 = vld [vmem:[%s138 + $0x5d0] sm:$0xff]
      %v333 = vld [vmem:[%s138 + $0x5d8] sm:$0xff]
      %v334 = vld [vmem:[%s138 + $0x5e0] sm:$0xff]
      %v335 = vld [vmem:[%s138 + $0x5e8] sm:$0xff]
      %v336 = vld [vmem:[%s138 + $0x5f0] sm:$0xff]
      %v337 = vld [vmem:[%s138 + $0x5f8] sm:$0xff]
      %v338 = vld [vmem:[%s138 + $0x600] sm:$0xff]
      %v339 = vld [vmem:[%s138 + $0x608] sm:$0xff]
      %v340 = vld [vmem:[%s138 + $0x610] sm:$0xff]
      %v341 = vld [vmem:[%s138 + $0x618] sm:$0xff]
      %v342 = vld [vmem:[%s138 + $0x620] sm:$0xff]
      %v343 = vld [vmem:[%s138 + $0x628] sm:$0xff]
      %v344 = vld [vmem:[%s138 + $0x630] sm:$0xff]
      %v345 = vld [vmem:[%s138 + $0x638] sm:$0xff]
      %v346 = vld [vmem:[%s138 + $0x640] sm:$0xff]
      %v347 = vld [vmem:[%s138 + $0x648] sm:$0xff]
      %v348 = vld [vmem:[%s138 + $0x650] sm:$0xff]
      %v349 = vld [vmem:[%s138 + $0x658] sm:$0xff]
      %v350 = vld [vmem:[%s138 + $0x660] sm:$0xff]
      %v351 = vld [vmem:[%s138 + $0x668] sm:$0xff]
      %v352 = vld [vmem:[%s138 + $0x670] sm:$0xff]
      %v353 = vld [vmem:[%s138 + $0x678] sm:$0xff]
      %v354 = vld [vmem:[%s138 + $0x680] sm:$0xff]
      %v355 = vld [vmem:[%s138 + $0x688] sm:$0xff]
      %v356 = vld [vmem:[%s138 + $0x690] sm:$0xff]
      %v357 = vld [vmem:[%s138 + $0x698] sm:$0xff]
      %v358 = vld [vmem:[%s138 + $0x6a0] sm:$0xff]
      %v359 = vld [vmem:[%s138 + $0x6a8] sm:$0xff]
      %v360 = vld [vmem:[%s138 + $0x6b0] sm:$0xff]
      %v361 = vld [vmem:[%s138 + $0x6b8] sm:$0xff]
      %v362 = vld [vmem:[%s138 + $0x6c0] sm:$0xff]
      %v363 = vld [vmem:[%s138 + $0x6c8] sm:$0xff]
      %v364 = vld [vmem:[%s138 + $0x6d0] sm:$0xff]
      %v365 = vld [vmem:[%s138 + $0x6d8] sm:$0xff]
      %v366 = vld [vmem:[%s138 + $0x6e0] sm:$0xff]
      %v367 = vld [vmem:[%s138 + $0x6e8] sm:$0xff]
      %v368 = vld [vmem:[%s138 + $0x6f0] sm:$0xff]
      %v369 = vld [vmem:[%s138 + $0x6f8] sm:$0xff]
      %v370 = vld [vmem:[%s138 + $0x700] sm:$0xff]
      %v371 = vld [vmem:[%s138 + $0x708] sm:$0xff]
      %v372 = vld [vmem:[%s138 + $0x710] sm:$0xff]
      %v373 = vld [vmem:[%s138 + $0x718] sm:$0xff]
      %v374 = vld [vmem:[%s138 + $0x720] sm:$0xff]
      %v375 = vld [vmem:[%s138 + $0x728] sm:$0xff]
      %v376 = vld [vmem:[%s138 + $0x730] sm:$0xff]
      %v377 = vld [vmem:[%s138 + $0x738] sm:$0xff]
      %v378 = vld [vmem:[%s138 + $0x740] sm:$0xff]
      %v379 = vld [vmem:[%s138 + $0x748] sm:$0xff]
      %v380 = vld [vmem:[%s138 + $0x750] sm:$0xff]
      %v381 = vld [vmem:[%s138 + $0x758] sm:$0xff]
      %v382 = vld [vmem:[%s138 + $0x760] sm:$0xff]
      %v383 = vld [vmem:[%s138 + $0x768] sm:$0xff]
      %v384 = vld [vmem:[%s138 + $0x770] sm:$0xff]
      %v385 = vld [vmem:[%s138 + $0x778] sm:$0xff]
      %v386 = vld [vmem:[%s138 + $0x780] sm:$0xff]
      %v387 = vld [vmem:[%s138 + $0x788] sm:$0xff]
      %v388 = vld [vmem:[%s138 + $0x790] sm:$0xff]
      %v389 = vld [vmem:[%s138 + $0x798] sm:$0xff]
      %v390 = vld [vmem:[%s138 + $0x7a0] sm:$0xff]
      %v391 = vld [vmem:[%s138 + $0x7a8] sm:$0xff]
      %v392 = vld [vmem:[%s138 + $0x7b0] sm:$0xff]
      %v393 = vld [vmem:[%s138 + $0x7b8] sm:$0xff]
      %v394 = vld [vmem:[%s138 + $0x7c0] sm:$0xff]
      %v395 = vld [vmem:[%s138 + $0x7c8] sm:$0xff]
      %v396 = vld [vmem:[%s138 + $0x7d0] sm:$0xff]
      %v397 = vld [vmem:[%s138 + $0x7d8] sm:$0xff]
      %v398 = vld [vmem:[%s138 + $0x7e0] sm:$0xff]
      %v399 = vld [vmem:[%s138 + $0x7e8] sm:$0xff]
      %v400 = vld [vmem:[%s138 + $0x7f0] sm:$0xff]
      %v401 = vld [vmem:[%s138 + $0x7f8] sm:$0xff]
      %vm402 = vcmask 31744
      %v403 = vsel %vm402, %v146, -inf
      %v404 = vsel %vm402, %v148, -inf
      %v405 = vmax.f32 %v403, %v404
      %v406 = vsel %vm402, %v150, -inf
      %v407 = vmax.f32 %v405, %v406
      %v408 = vsel %vm402, %v152, -inf
      %v409 = vmax.f32 %v407, %v408
      %v410 = vsel %vm402, %v147, -inf
      %v411 = vsel %vm402, %v149, -inf
      %v412 = vmax.f32 %v410, %v411
      %v413 = vsel %vm402, %v151, -inf
      %v414 = vmax.f32 %v412, %v413
      %v415 = vsel %vm402, %v153, -inf
      %v416 = vmax.f32 %v414, %v415
      %v417 = vsel %vm402, %v178, -inf
      %v418 = vsel %vm402, %v180, -inf
      %v419 = vmax.f32 %v417, %v418
      %v420 = vsel %vm402, %v182, -inf
      %v421 = vmax.f32 %v419, %v420
      %v422 = vsel %vm402, %v184, -inf
      %v423 = vmax.f32 %v421, %v422
      %v424 = vsel %vm402, %v179, -inf
      %v425 = vsel %vm402, %v181, -inf
      %v426 = vmax.f32 %v424, %v425
      %v427 = vsel %vm402, %v183, -inf
      %v428 = vmax.f32 %v426, %v427
      %v429 = vsel %vm402, %v185, -inf
      %v430 = vmax.f32 %v428, %v429
      %v431 = vsel %vm402, %v409, -inf
      %v432 = vsel %vm402, %v423, -inf
      %v433 = vmax.f32 %v431, %v432
      %v434 = vsel %vm402, %v416, -inf
      %v435 = vsel %vm402, %v430, -inf
      %v436 = vmax.f32 %v434, %v435
      %vm437 = vcmask 27648
      %v438 = vsel %vm437, %v433, -inf
      %v439 = vrot.slane %v438, 4
      %v440 = vmax.f32 %v438, %v439
      %v441 = vrot.slane %v440, 2
      %v442 = vmax.f32 %v440, %v441
      %v443 = vrot.slane %v442, 1
      %v444 = vmax.f32 %v442, %v443
      %vm445 = vcmask 31748
      %v446 = vsel %vm445, %v433, -inf
      %v447 = vrot.slane %v446, 4
      %v448 = vmax.f32 %v446, %v447
      %v449 = vrot.slane %v448, 2
      %v450 = vmax.f32 %v448, %v449
      %v451 = vrot.slane %v450, 1
      %v452 = vmax.f32 %v450, %v451
      %v453 = vsel %vm437, %v436, -inf
      %v454 = vrot.slane %v453, 4
      %v455 = vmax.f32 %v453, %v454
      %v456 = vrot.slane %v455, 2
      %v457 = vmax.f32 %v455, %v456
      %v458 = vrot.slane %v457, 1
      %v459 = vmax.f32 %v457, %v458
      %v460 = vsel %vm445, %v436, -inf
      %v461 = vrot.slane %v460, 4
      %v462 = vmax.f32 %v460, %v461
      %v463 = vrot.slane %v462, 2
      %v464 = vmax.f32 %v462, %v463
      %v465 = vrot.slane %v464, 1
      %v466 = vmax.f32 %v464, %v465
      %v467 = vsel %vm402, %v154, -inf
      %v468 = vsel %vm402, %v156, -inf
      %v469 = vmax.f32 %v467, %v468
      %v470 = vsel %vm402, %v158, -inf
      %v471 = vmax.f32 %v469, %v470
      %v472 = vsel %vm402, %v160, -inf
      %v473 = vmax.f32 %v471, %v472
      %v474 = vsel %vm402, %v155, -inf
      %v475 = vsel %vm402, %v157, -inf
      %v476 = vmax.f32 %v474, %v475
      %v477 = vsel %vm402, %v159, -inf
      %v478 = vmax.f32 %v476, %v477
      %v479 = vsel %vm402, %v161, -inf
      %v480 = vmax.f32 %v478, %v479
      %v481 = vsel %vm402, %v186, -inf
      %v482 = vsel %vm402, %v188, -inf
      %v483 = vmax.f32 %v481, %v482
      %v484 = vsel %vm402, %v190, -inf
      %v485 = vmax.f32 %v483, %v484
      %v486 = vsel %vm402, %v192, -inf
      %v487 = vmax.f32 %v485, %v486
      %v488 = vsel %vm402, %v187, -inf
      %v489 = vsel %vm402, %v189, -inf
      %v490 = vmax.f32 %v488, %v489
      %v491 = vsel %vm402, %v191, -inf
      %v492 = vmax.f32 %v490, %v491
      %v493 = vsel %vm402, %v193, -inf
      %v494 = vmax.f32 %v492, %v493
      %v495 = vsel %vm402, %v473, -inf
      %v496 = vsel %vm402, %v487, -inf
      %v497 = vmax.f32 %v495, %v496
      %v498 = vsel %vm402, %v480, -inf
      %v499 = vsel %vm402, %v494, -inf
      %v500 = vmax.f32 %v498, %v499
      %v501 = vsel %vm437, %v497, -inf
      %v502 = vrot.slane %v501, 4
      %v503 = vmax.f32 %v501, %v502
      %v504 = vrot.slane %v503, 2
      %v505 = vmax.f32 %v503, %v504
      %v506 = vrot.slane %v505, 1
      %v507 = vmax.f32 %v505, %v506
      %v508 = vsel %vm445, %v497, -inf
      %v509 = vrot.slane %v508, 4
      %v510 = vmax.f32 %v508, %v509
      %v511 = vrot.slane %v510, 2
      %v512 = vmax.f32 %v510, %v511
      %v513 = vrot.slane %v512, 1
      %v514 = vmax.f32 %v512, %v513
      %v515 = vsel %vm437, %v500, -inf
      %v516 = vrot.slane %v515, 4
      %v517 = vmax.f32 %v515, %v516
      %v518 = vrot.slane %v517, 2
      %v519 = vmax.f32 %v517, %v518
      %v520 = vrot.slane %v519, 1
      %v521 = vmax.f32 %v519, %v520
      %v522 = vsel %vm445, %v500, -inf
      %v523 = vrot.slane %v522, 4
      %v524 = vmax.f32 %v522, %v523
      %v525 = vrot.slane %v524, 2
      %v526 = vmax.f32 %v524, %v525
      %v527 = vrot.slane %v526, 1
      %v528 = vmax.f32 %v526, %v527
      %v529 = vsel %vm402, %v162, -inf
      %v530 = vsel %vm402, %v164, -inf
      %v531 = vmax.f32 %v529, %v530
      %v532 = vsel %vm402, %v166, -inf
      %v533 = vmax.f32 %v531, %v532
      %v534 = vsel %vm402, %v168, -inf
      %v535 = vmax.f32 %v533, %v534
      %v536 = vsel %vm402, %v163, -inf
      %v537 = vsel %vm402, %v165, -inf
      %v538 = vmax.f32 %v536, %v537
      %v539 = vsel %vm402, %v167, -inf
      %v540 = vmax.f32 %v538, %v539
      %v541 = vsel %vm402, %v169, -inf
      %v542 = vmax.f32 %v540, %v541
      %v543 = vsel %vm402, %v194, -inf
      %v544 = vsel %vm402, %v196, -inf
      %v545 = vmax.f32 %v543, %v544
      %v546 = vsel %vm402, %v198, -inf
      %v547 = vmax.f32 %v545, %v546
      %v548 = vsel %vm402, %v200, -inf
      %v549 = vmax.f32 %v547, %v548
      %v550 = vsel %vm402, %v195, -inf
      %v551 = vsel %vm402, %v197, -inf
      %v552 = vmax.f32 %v550, %v551
      %v553 = vsel %vm402, %v199, -inf
      %v554 = vmax.f32 %v552, %v553
      %v555 = vsel %vm402, %v201, -inf
      %v556 = vmax.f32 %v554, %v555
      %v557 = vsel %vm402, %v535, -inf
      %v558 = vsel %vm402, %v549, -inf
      %v559 = vmax.f32 %v557, %v558
      %v560 = vsel %vm402, %v542, -inf
      %v561 = vsel %vm402, %v556, -inf
      %v562 = vmax.f32 %v560, %v561
      %v563 = vsel %vm437, %v559, -inf
      %v564 = vrot.slane %v563, 4
      %v565 = vmax.f32 %v563, %v564
      %v566 = vrot.slane %v565, 2
      %v567 = vmax.f32 %v565, %v566
      %v568 = vrot.slane %v567, 1
      %v569 = vmax.f32 %v567, %v568
      %v570 = vsel %vm445, %v559, -inf
      %v571 = vrot.slane %v570, 4
      %v572 = vmax.f32 %v570, %v571
      %v573 = vrot.slane %v572, 2
      %v574 = vmax.f32 %v572, %v573
      %v575 = vrot.slane %v574, 1
      %v576 = vmax.f32 %v574, %v575
      %v577 = vsel %vm437, %v562, -inf
      %v578 = vrot.slane %v577, 4
      %v579 = vmax.f32 %v577, %v578
      %v580 = vrot.slane %v579, 2
      %v581 = vmax.f32 %v579, %v580
      %v582 = vrot.slane %v581, 1
      %v583 = vmax.f32 %v581, %v582
      %v584 = vsel %vm445, %v562, -inf
      %v585 = vrot.slane %v584, 4
      %v586 = vmax.f32 %v584, %v585
      %v587 = vrot.slane %v586, 2
      %v588 = vmax.f32 %v586, %v587
      %v589 = vrot.slane %v588, 1
      %v590 = vmax.f32 %v588, %v589
      %v591 = vsel %vm402, %v170, -inf
      %v592 = vsel %vm402, %v172, -inf
      %v593 = vmax.f32 %v591, %v592
      %v594 = vsel %vm402, %v174, -inf
      %v595 = vmax.f32 %v593, %v594
      %v596 = vsel %vm402, %v176, -inf
      %v597 = vmax.f32 %v595, %v596
      %v598 = vsel %vm402, %v171, -inf
      %v599 = vsel %vm402, %v173, -inf
      %v600 = vmax.f32 %v598, %v599
      %v601 = vsel %vm402, %v175, -inf
      %v602 = vmax.f32 %v600, %v601
      %v603 = vsel %vm402, %v177, -inf
      %v604 = vmax.f32 %v602, %v603
      %v605 = vsel %vm402, %v202, -inf
      %v606 = vsel %vm402, %v204, -inf
      %v607 = vmax.f32 %v605, %v606
      %v608 = vsel %vm402, %v206, -inf
      %v609 = vmax.f32 %v607, %v608
      %v610 = vsel %vm402, %v208, -inf
      %v611 = vmax.f32 %v609, %v610
      %v612 = vsel %vm402, %v203, -inf
      %v613 = vsel %vm402, %v205, -inf
      %v614 = vmax.f32 %v612, %v613
      %v615 = vsel %vm402, %v207, -inf
      %v616 = vmax.f32 %v614, %v615
      %v617 = vsel %vm402, %v209, -inf
      %v618 = vmax.f32 %v616, %v617
      %v619 = vsel %vm402, %v597, -inf
      %v620 = vsel %vm402, %v611, -inf
      %v621 = vmax.f32 %v619, %v620
      %v622 = vsel %vm402, %v604, -inf
      %v623 = vsel %vm402, %v618, -inf
      %v624 = vmax.f32 %v622, %v623
      %v625 = vsel %vm437, %v621, -inf
      %v626 = vrot.slane %v625, 4
      %v627 = vmax.f32 %v625, %v626
      %v628 = vrot.slane %v627, 2
      %v629 = vmax.f32 %v627, %v628
      %v630 = vrot.slane %v629, 1
      %v631 = vmax.f32 %v629, %v630
      %v632 = vsel %vm445, %v621, -inf
      %v633 = vrot.slane %v632, 4
      %v634 = vmax.f32 %v632, %v633
      %v635 = vrot.slane %v634, 2
      %v636 = vmax.f32 %v634, %v635
      %v637 = vrot.slane %v636, 1
      %v638 = vmax.f32 %v636, %v637
      %v639 = vsel %vm437, %v624, -inf
      %v640 = vrot.slane %v639, 4
      %v641 = vmax.f32 %v639, %v640
      %v642 = vrot.slane %v641, 2
      %v643 = vmax.f32 %v641, %v642
      %v644 = vrot.slane %v643, 1
      %v645 = vmax.f32 %v643, %v644
      %v646 = vsel %vm445, %v624, -inf
      %v647 = vrot.slane %v646, 4
      %v648 = vmax.f32 %v646, %v647
      %v649 = vrot.slane %v648, 2
      %v650 = vmax.f32 %v648, %v649
      %v651 = vrot.slane %v650, 1
      %v652 = vmax.f32 %v650, %v651
      %v653 = vsel %vm402, %v210, -inf
      %v654 = vsel %vm402, %v212, -inf
      %v655 = vmax.f32 %v653, %v654
      %v656 = vsel %vm402, %v214, -inf
      %v657 = vmax.f32 %v655, %v656
      %v658 = vsel %vm402, %v216, -inf
      %v659 = vmax.f32 %v657, %v658
      %v660 = vsel %vm402, %v211, -inf
      %v661 = vsel %vm402, %v213, -inf
      %v662 = vmax.f32 %v660, %v661
      %v663 = vsel %vm402, %v215, -inf
      %v664 = vmax.f32 %v662, %v663
      %v665 = vsel %vm402, %v217, -inf
      %v666 = vmax.f32 %v664, %v665
      %v667 = vsel %vm402, %v242, -inf
      %v668 = vsel %vm402, %v244, -inf
      %v669 = vmax.f32 %v667, %v668
      %v670 = vsel %vm402, %v246, -inf
      %v671 = vmax.f32 %v669, %v670
      %v672 = vsel %vm402, %v248, -inf
      %v673 = vmax.f32 %v671, %v672
      %v674 = vsel %vm402, %v243, -inf
      %v675 = vsel %vm402, %v245, -inf
      %v676 = vmax.f32 %v674, %v675
      %v677 = vsel %vm402, %v247, -inf
      %v678 = vmax.f32 %v676, %v677
      %v679 = vsel %vm402, %v249, -inf
      %v680 = vmax.f32 %v678, %v679
      %v681 = vsel %vm402, %v659, -inf
      %v682 = vsel %vm402, %v673, -inf
      %v683 = vmax.f32 %v681, %v682
      %v684 = vsel %vm402, %v666, -inf
      %v685 = vsel %vm402, %v680, -inf
      %v686 = vmax.f32 %v684, %v685
      %v687 = vsel %vm437, %v683, -inf
      %v688 = vrot.slane %v687, 4
      %v689 = vmax.f32 %v687, %v688
      %v690 = vrot.slane %v689, 2
      %v691 = vmax.f32 %v689, %v690
      %v692 = vrot.slane %v691, 1
      %v693 = vmax.f32 %v691, %v692
      %v694 = vsel %vm445, %v683, -inf
      %v695 = vrot.slane %v694, 4
      %v696 = vmax.f32 %v694, %v695
      %v697 = vrot.slane %v696, 2
      %v698 = vmax.f32 %v696, %v697
      %v699 = vrot.slane %v698, 1
      %v700 = vmax.f32 %v698, %v699
      %v701 = vsel %vm437, %v686, -inf
      %v702 = vrot.slane %v701, 4
      %v703 = vmax.f32 %v701, %v702
      %v704 = vrot.slane %v703, 2
      %v705 = vmax.f32 %v703, %v704
      %v706 = vrot.slane %v705, 1
      %v707 = vmax.f32 %v705, %v706
      %v708 = vsel %vm445, %v686, -inf
      %v709 = vrot.slane %v708, 4
      %v710 = vmax.f32 %v708, %v709
      %v711 = vrot.slane %v710, 2
      %v712 = vmax.f32 %v710, %v711
      %v713 = vrot.slane %v712, 1
      %v714 = vmax.f32 %v712, %v713
      %v715 = vsel %vm402, %v218, -inf
      %v716 = vsel %vm402, %v220, -inf
      %v717 = vmax.f32 %v715, %v716
      %v718 = vsel %vm402, %v222, -inf
      %v719 = vmax.f32 %v717, %v718
      %v720 = vsel %vm402, %v224, -inf
      %v721 = vmax.f32 %v719, %v720
      %v722 = vsel %vm402, %v219, -inf
      %v723 = vsel %vm402, %v221, -inf
      %v724 = vmax.f32 %v722, %v723
      %v725 = vsel %vm402, %v223, -inf
      %v726 = vmax.f32 %v724, %v725
      %v727 = vsel %vm402, %v225, -inf
      %v728 = vmax.f32 %v726, %v727
      %v729 = vsel %vm402, %v250, -inf
      %v730 = vsel %vm402, %v252, -inf
      %v731 = vmax.f32 %v729, %v730
      %v732 = vsel %vm402, %v254, -inf
      %v733 = vmax.f32 %v731, %v732
      %v734 = vsel %vm402, %v256, -inf
      %v735 = vmax.f32 %v733, %v734
      %v736 = vsel %vm402, %v251, -inf
      %v737 = vsel %vm402, %v253, -inf
      %v738 = vmax.f32 %v736, %v737
      %v739 = vsel %vm402, %v255, -inf
      %v740 = vmax.f32 %v738, %v739
      %v741 = vsel %vm402, %v257, -inf
      %v742 = vmax.f32 %v740, %v741
      %v743 = vsel %vm402, %v721, -inf
      %v744 = vsel %vm402, %v735, -inf
      %v745 = vmax.f32 %v743, %v744
      %v746 = vsel %vm402, %v728, -inf
      %v747 = vsel %vm402, %v742, -inf
      %v748 = vmax.f32 %v746, %v747
      %v749 = vsel %vm437, %v745, -inf
      %v750 = vrot.slane %v749, 4
      %v751 = vmax.f32 %v749, %v750
      %v752 = vrot.slane %v751, 2
      %v753 = vmax.f32 %v751, %v752
      %v754 = vrot.slane %v753, 1
      %v755 = vmax.f32 %v753, %v754
      %v756 = vsel %vm445, %v745, -inf
      %v757 = vrot.slane %v756, 4
      %v758 = vmax.f32 %v756, %v757
      %v759 = vrot.slane %v758, 2
      %v760 = vmax.f32 %v758, %v759
      %v761 = vrot.slane %v760, 1
      %v762 = vmax.f32 %v760, %v761
      %v763 = vsel %vm437, %v748, -inf
      %v764 = vrot.slane %v763, 4
      %v765 = vmax.f32 %v763, %v764
      %v766 = vrot.slane %v765, 2
      %v767 = vmax.f32 %v765, %v766
      %v768 = vrot.slane %v767, 1
      %v769 = vmax.f32 %v767, %v768
      %v770 = vsel %vm445, %v748, -inf
      %v771 = vrot.slane %v770, 4
      %v772 = vmax.f32 %v770, %v771
      %v773 = vrot.slane %v772, 2
      %v774 = vmax.f32 %v772, %v773
      %v775 = vrot.slane %v774, 1
      %v776 = vmax.f32 %v774, %v775
      %v777 = vsel %vm402, %v226, -inf
      %v778 = vsel %vm402, %v228, -inf
      %v779 = vmax.f32 %v777, %v778
      %v780 = vsel %vm402, %v230, -inf
      %v781 = vmax.f32 %v779, %v780
      %v782 = vsel %vm402, %v232, -inf
      %v783 = vmax.f32 %v781, %v782
      %v784 = vsel %vm402, %v227, -inf
      %v785 = vsel %vm402, %v229, -inf
      %v786 = vmax.f32 %v784, %v785
      %v787 = vsel %vm402, %v231, -inf
      %v788 = vmax.f32 %v786, %v787
      %v789 = vsel %vm402, %v233, -inf
      %v790 = vmax.f32 %v788, %v789
      %v791 = vsel %vm402, %v258, -inf
      %v792 = vsel %vm402, %v260, -inf
      %v793 = vmax.f32 %v791, %v792
      %v794 = vsel %vm402, %v262, -inf
      %v795 = vmax.f32 %v793, %v794
      %v796 = vsel %vm402, %v264, -inf
      %v797 = vmax.f32 %v795, %v796
      %v798 = vsel %vm402, %v259, -inf
      %v799 = vsel %vm402, %v261, -inf
      %v800 = vmax.f32 %v798, %v799
      %v801 = vsel %vm402, %v263, -inf
      %v802 = vmax.f32 %v800, %v801
      %v803 = vsel %vm402, %v265, -inf
      %v804 = vmax.f32 %v802, %v803
      %v805 = vsel %vm402, %v783, -inf
      %v806 = vsel %vm402, %v797, -inf
      %v807 = vmax.f32 %v805, %v806
      %v808 = vsel %vm402, %v790, -inf
      %v809 = vsel %vm402, %v804, -inf
      %v810 = vmax.f32 %v808, %v809
      %v811 = vsel %vm437, %v807, -inf
      %v812 = vrot.slane %v811, 4
      %v813 = vmax.f32 %v811, %v812
      %v814 = vrot.slane %v813, 2
      %v815 = vmax.f32 %v813, %v814
      %v816 = vrot.slane %v815, 1
      %v817 = vmax.f32 %v815, %v816
      %v818 = vsel %vm445, %v807, -inf
      %v819 = vrot.slane %v818, 4
      %v820 = vmax.f32 %v818, %v819
      %v821 = vrot.slane %v820, 2
      %v822 = vmax.f32 %v820, %v821
      %v823 = vrot.slane %v822, 1
      %v824 = vmax.f32 %v822, %v823
      %v825 = vsel %vm437, %v810, -inf
      %v826 = vrot.slane %v825, 4
      %v827 = vmax.f32 %v825, %v826
      %v828 = vrot.slane %v827, 2
      %v829 = vmax.f32 %v827, %v828
      %v830 = vrot.slane %v829, 1
      %v831 = vmax.f32 %v829, %v830
      %v832 = vsel %vm445, %v810, -inf
      %v833 = vrot.slane %v832, 4
      %v834 = vmax.f32 %v832, %v833
      %v835 = vrot.slane %v834, 2
      %v836 = vmax.f32 %v834, %v835
      %v837 = vrot.slane %v836, 1
      %v838 = vmax.f32 %v836, %v837
      %v839 = vsel %vm402, %v234, -inf
      %v840 = vsel %vm402, %v236, -inf
      %v841 = vmax.f32 %v839, %v840
      %v842 = vsel %vm402, %v238, -inf
      %v843 = vmax.f32 %v841, %v842
      %v844 = vsel %vm402, %v240, -inf
      %v845 = vmax.f32 %v843, %v844
      %v846 = vsel %vm402, %v235, -inf
      %v847 = vsel %vm402, %v237, -inf
      %v848 = vmax.f32 %v846, %v847
      %v849 = vsel %vm402, %v239, -inf
      %v850 = vmax.f32 %v848, %v849
      %v851 = vsel %vm402, %v241, -inf
      %v852 = vmax.f32 %v850, %v851
      %v853 = vsel %vm402, %v266, -inf
      %v854 = vsel %vm402, %v268, -inf
      %v855 = vmax.f32 %v853, %v854
      %v856 = vsel %vm402, %v270, -inf
      %v857 = vmax.f32 %v855, %v856
      %v858 = vsel %vm402, %v272, -inf
      %v859 = vmax.f32 %v857, %v858
      %v860 = vsel %vm402, %v267, -inf
      %v861 = vsel %vm402, %v269, -inf
      %v862 = vmax.f32 %v860, %v861
      %v863 = vsel %vm402, %v271, -inf
      %v864 = vmax.f32 %v862, %v863
      %v865 = vsel %vm402, %v273, -inf
      %v866 = vmax.f32 %v864, %v865
      %v867 = vsel %vm402, %v845, -inf
      %v868 = vsel %vm402, %v859, -inf
      %v869 = vmax.f32 %v867, %v868
      %v870 = vsel %vm402, %v852, -inf
      %v871 = vsel %vm402, %v866, -inf
      %v872 = vmax.f32 %v870, %v871
      %v873 = vsel %vm437, %v869, -inf
      %v874 = vrot.slane %v873, 4
      %v875 = vmax.f32 %v873, %v874
      %v876 = vrot.slane %v875, 2
      %v877 = vmax.f32 %v875, %v876
      %v878 = vrot.slane %v877, 1
      %v879 = vmax.f32 %v877, %v878
      %v880 = vsel %vm445, %v869, -inf
      %v881 = vrot.slane %v880, 4
      %v882 = vmax.f32 %v880, %v881
      %v883 = vrot.slane %v882, 2
      %v884 = vmax.f32 %v882, %v883
      %v885 = vrot.slane %v884, 1
      %v886 = vmax.f32 %v884, %v885
      %v887 = vsel %vm437, %v872, -inf
      %v888 = vrot.slane %v887, 4
      %v889 = vmax.f32 %v887, %v888
      %v890 = vrot.slane %v889, 2
      %v891 = vmax.f32 %v889, %v890
      %v892 = vrot.slane %v891, 1
      %v893 = vmax.f32 %v891, %v892
      %v894 = vsel %vm445, %v872, -inf
      %v895 = vrot.slane %v894, 4
      %v896 = vmax.f32 %v894, %v895
      %v897 = vrot.slane %v896, 2
      %v898 = vmax.f32 %v896, %v897
      %v899 = vrot.slane %v898, 1
      %v900 = vmax.f32 %v898, %v899
      %v901 = vsel %vm402, %v274, -inf
      %v902 = vsel %vm402, %v276, -inf
      %v903 = vmax.f32 %v901, %v902
      %v904 = vsel %vm402, %v278, -inf
      %v905 = vmax.f32 %v903, %v904
      %v906 = vsel %vm402, %v280, -inf
      %v907 = vmax.f32 %v905, %v906
      %v908 = vsel %vm402, %v275, -inf
      %v909 = vsel %vm402, %v277, -inf
      %v910 = vmax.f32 %v908, %v909
      %v911 = vsel %vm402, %v279, -inf
      %v912 = vmax.f32 %v910, %v911
      %v913 = vsel %vm402, %v281, -inf
      %v914 = vmax.f32 %v912, %v913
      %v915 = vsel %vm402, %v306, -inf
      %v916 = vsel %vm402, %v308, -inf
      %v917 = vmax.f32 %v915, %v916
      %v918 = vsel %vm402, %v310, -inf
      %v919 = vmax.f32 %v917, %v918
      %v920 = vsel %vm402, %v312, -inf
      %v921 = vmax.f32 %v919, %v920
      %v922 = vsel %vm402, %v307, -inf
      %v923 = vsel %vm402, %v309, -inf
      %v924 = vmax.f32 %v922, %v923
      %v925 = vsel %vm402, %v311, -inf
      %v926 = vmax.f32 %v924, %v925
      %v927 = vsel %vm402, %v313, -inf
      %v928 = vmax.f32 %v926, %v927
      %v929 = vsel %vm402, %v907, -inf
      %v930 = vsel %vm402, %v921, -inf
      %v931 = vmax.f32 %v929, %v930
      %v932 = vsel %vm402, %v914, -inf
      %v933 = vsel %vm402, %v928, -inf
      %v934 = vmax.f32 %v932, %v933
      %v935 = vsel %vm437, %v931, -inf
      %v936 = vrot.slane %v935, 4
      %v937 = vmax.f32 %v935, %v936
      %v938 = vrot.slane %v937, 2
      %v939 = vmax.f32 %v937, %v938
      %v940 = vrot.slane %v939, 1
      %v941 = vmax.f32 %v939, %v940
      %v942 = vsel %vm445, %v931, -inf
      %v943 = vrot.slane %v942, 4
      %v944 = vmax.f32 %v942, %v943
      %v945 = vrot.slane %v944, 2
      %v946 = vmax.f32 %v944, %v945
      %v947 = vrot.slane %v946, 1
      %v948 = vmax.f32 %v946, %v947
      %v949 = vsel %vm437, %v934, -inf
      %v950 = vrot.slane %v949, 4
      %v951 = vmax.f32 %v949, %v950
      %v952 = vrot.slane %v951, 2
      %v953 = vmax.f32 %v951, %v952
      %v954 = vrot.slane %v953, 1
      %v955 = vmax.f32 %v953, %v954
      %v956 = vsel %vm445, %v934, -inf
      %v957 = vrot.slane %v956, 4
      %v958 = vmax.f32 %v956, %v957
      %v959 = vrot.slane %v958, 2
      %v960 = vmax.f32 %v958, %v959
      %v961 = vrot.slane %v960, 1
      %v962 = vmax.f32 %v960, %v961
      %v963 = vsel %vm402, %v282, -inf
      %v964 = vsel %vm402, %v284, -inf
      %v965 = vmax.f32 %v963, %v964
      %v966 = vsel %vm402, %v286, -inf
      %v967 = vmax.f32 %v965, %v966
      %v968 = vsel %vm402, %v288, -inf
      %v969 = vmax.f32 %v967, %v968
      %v970 = vsel %vm402, %v283, -inf
      %v971 = vsel %vm402, %v285, -inf
      %v972 = vmax.f32 %v970, %v971
      %v973 = vsel %vm402, %v287, -inf
      %v974 = vmax.f32 %v972, %v973
      %v975 = vsel %vm402, %v289, -inf
      %v976 = vmax.f32 %v974, %v975
      %v977 = vsel %vm402, %v314, -inf
      %v978 = vsel %vm402, %v316, -inf
      %v979 = vmax.f32 %v977, %v978
      %v980 = vsel %vm402, %v318, -inf
      %v981 = vmax.f32 %v979, %v980
      %v982 = vsel %vm402, %v320, -inf
      %v983 = vmax.f32 %v981, %v982
      %v984 = vsel %vm402, %v315, -inf
      %v985 = vsel %vm402, %v317, -inf
      %v986 = vmax.f32 %v984, %v985
      %v987 = vsel %vm402, %v319, -inf
      %v988 = vmax.f32 %v986, %v987
      %v989 = vsel %vm402, %v321, -inf
      %v990 = vmax.f32 %v988, %v989
      %v991 = vsel %vm402, %v969, -inf
      %v992 = vsel %vm402, %v983, -inf
      %v993 = vmax.f32 %v991, %v992
      %v994 = vsel %vm402, %v976, -inf
      %v995 = vsel %vm402, %v990, -inf
      %v996 = vmax.f32 %v994, %v995
      %v997 = vsel %vm437, %v993, -inf
      %v998 = vrot.slane %v997, 4
      %v999 = vmax.f32 %v997, %v998
      %v1000 = vrot.slane %v999, 2
      %v1001 = vmax.f32 %v999, %v1000
      %v1002 = vrot.slane %v1001, 1
      %v1003 = vmax.f32 %v1001, %v1002
      %v1004 = vsel %vm445, %v993, -inf
      %v1005 = vrot.slane %v1004, 4
      %v1006 = vmax.f32 %v1004, %v1005
      %v1007 = vrot.slane %v1006, 2
      %v1008 = vmax.f32 %v1006, %v1007
      %v1009 = vrot.slane %v1008, 1
      %v1010 = vmax.f32 %v1008, %v1009
      %v1011 = vsel %vm437, %v996, -inf
      %v1012 = vrot.slane %v1011, 4
      %v1013 = vmax.f32 %v1011, %v1012
      %v1014 = vrot.slane %v1013, 2
      %v1015 = vmax.f32 %v1013, %v1014
      %v1016 = vrot.slane %v1015, 1
      %v1017 = vmax.f32 %v1015, %v1016
      %v1018 = vsel %vm445, %v996, -inf
      %v1019 = vrot.slane %v1018, 4
      %v1020 = vmax.f32 %v1018, %v1019
      %v1021 = vrot.slane %v1020, 2
      %v1022 = vmax.f32 %v1020, %v1021
      %v1023 = vrot.slane %v1022, 1
      %v1024 = vmax.f32 %v1022, %v1023
      %v1025 = vsel %vm402, %v290, -inf
      %v1026 = vsel %vm402, %v292, -inf
      %v1027 = vmax.f32 %v1025, %v1026
      %v1028 = vsel %vm402, %v294, -inf
      %v1029 = vmax.f32 %v1027, %v1028
      %v1030 = vsel %vm402, %v296, -inf
      %v1031 = vmax.f32 %v1029, %v1030
      %v1032 = vsel %vm402, %v291, -inf
      %v1033 = vsel %vm402, %v293, -inf
      %v1034 = vmax.f32 %v1032, %v1033
      %v1035 = vsel %vm402, %v295, -inf
      %v1036 = vmax.f32 %v1034, %v1035
      %v1037 = vsel %vm402, %v297, -inf
      %v1038 = vmax.f32 %v1036, %v1037
      %v1039 = vsel %vm402, %v322, -inf
      %v1040 = vsel %vm402, %v324, -inf
      %v1041 = vmax.f32 %v1039, %v1040
      %v1042 = vsel %vm402, %v326, -inf
      %v1043 = vmax.f32 %v1041, %v1042
      %v1044 = vsel %vm402, %v328, -inf
      %v1045 = vmax.f32 %v1043, %v1044
      %v1046 = vsel %vm402, %v323, -inf
      %v1047 = vsel %vm402, %v325, -inf
      %v1048 = vmax.f32 %v1046, %v1047
      %v1049 = vsel %vm402, %v327, -inf
      %v1050 = vmax.f32 %v1048, %v1049
      %v1051 = vsel %vm402, %v329, -inf
      %v1052 = vmax.f32 %v1050, %v1051
      %v1053 = vsel %vm402, %v1031, -inf
      %v1054 = vsel %vm402, %v1045, -inf
      %v1055 = vmax.f32 %v1053, %v1054
      %v1056 = vsel %vm402, %v1038, -inf
      %v1057 = vsel %vm402, %v1052, -inf
      %v1058 = vmax.f32 %v1056, %v1057
      %v1059 = vsel %vm437, %v1055, -inf
      %v1060 = vrot.slane %v1059, 4
      %v1061 = vmax.f32 %v1059, %v1060
      %v1062 = vrot.slane %v1061, 2
      %v1063 = vmax.f32 %v1061, %v1062
      %v1064 = vrot.slane %v1063, 1
      %v1065 = vmax.f32 %v1063, %v1064
      %v1066 = vsel %vm445, %v1055, -inf
      %v1067 = vrot.slane %v1066, 4
      %v1068 = vmax.f32 %v1066, %v1067
      %v1069 = vrot.slane %v1068, 2
      %v1070 = vmax.f32 %v1068, %v1069
      %v1071 = vrot.slane %v1070, 1
      %v1072 = vmax.f32 %v1070, %v1071
      %v1073 = vsel %vm437, %v1058, -inf
      %v1074 = vrot.slane %v1073, 4
      %v1075 = vmax.f32 %v1073, %v1074
      %v1076 = vrot.slane %v1075, 2
      %v1077 = vmax.f32 %v1075, %v1076
      %v1078 = vrot.slane %v1077, 1
      %v1079 = vmax.f32 %v1077, %v1078
      %v1080 = vsel %vm445, %v1058, -inf
      %v1081 = vrot.slane %v1080, 4
      %v1082 = vmax.f32 %v1080, %v1081
      %v1083 = vrot.slane %v1082, 2
      %v1084 = vmax.f32 %v1082, %v1083
      %v1085 = vrot.slane %v1084, 1
      %v1086 = vmax.f32 %v1084, %v1085
      %v1087 = vsel %vm402, %v298, -inf
      %v1088 = vsel %vm402, %v300, -inf
      %v1089 = vmax.f32 %v1087, %v1088
      %v1090 = vsel %vm402, %v302, -inf
      %v1091 = vmax.f32 %v1089, %v1090
      %v1092 = vsel %vm402, %v304, -inf
      %v1093 = vmax.f32 %v1091, %v1092
      %v1094 = vsel %vm402, %v299, -inf
      %v1095 = vsel %vm402, %v301, -inf
      %v1096 = vmax.f32 %v1094, %v1095
      %v1097 = vsel %vm402, %v303, -inf
      %v1098 = vmax.f32 %v1096, %v1097
      %v1099 = vsel %vm402, %v305, -inf
      %v1100 = vmax.f32 %v1098, %v1099
      %v1101 = vsel %vm402, %v330, -inf
      %v1102 = vsel %vm402, %v332, -inf
      %v1103 = vmax.f32 %v1101, %v1102
      %v1104 = vsel %vm402, %v334, -inf
      %v1105 = vmax.f32 %v1103, %v1104
      %v1106 = vsel %vm402, %v336, -inf
      %v1107 = vmax.f32 %v1105, %v1106
      %v1108 = vsel %vm402, %v331, -inf
      %v1109 = vsel %vm402, %v333, -inf
      %v1110 = vmax.f32 %v1108, %v1109
      %v1111 = vsel %vm402, %v335, -inf
      %v1112 = vmax.f32 %v1110, %v1111
      %v1113 = vsel %vm402, %v337, -inf
      %v1114 = vmax.f32 %v1112, %v1113
      %v1115 = vsel %vm402, %v1093, -inf
      %v1116 = vsel %vm402, %v1107, -inf
      %v1117 = vmax.f32 %v1115, %v1116
      %v1118 = vsel %vm402, %v1100, -inf
      %v1119 = vsel %vm402, %v1114, -inf
      %v1120 = vmax.f32 %v1118, %v1119
      %v1121 = vsel %vm437, %v1117, -inf
      %v1122 = vrot.slane %v1121, 4
      %v1123 = vmax.f32 %v1121, %v1122
      %v1124 = vrot.slane %v1123, 2
      %v1125 = vmax.f32 %v1123, %v1124
      %v1126 = vrot.slane %v1125, 1
      %v1127 = vmax.f32 %v1125, %v1126
      %v1128 = vsel %vm445, %v1117, -inf
      %v1129 = vrot.slane %v1128, 4
      %v1130 = vmax.f32 %v1128, %v1129
      %v1131 = vrot.slane %v1130, 2
      %v1132 = vmax.f32 %v1130, %v1131
      %v1133 = vrot.slane %v1132, 1
      %v1134 = vmax.f32 %v1132, %v1133
      %v1135 = vsel %vm437, %v1120, -inf
      %v1136 = vrot.slane %v1135, 4
      %v1137 = vmax.f32 %v1135, %v1136
      %v1138 = vrot.slane %v1137, 2
      %v1139 = vmax.f32 %v1137, %v1138
      %v1140 = vrot.slane %v1139, 1
      %v1141 = vmax.f32 %v1139, %v1140
      %v1142 = vsel %vm445, %v1120, -inf
      %v1143 = vrot.slane %v1142, 4
      %v1144 = vmax.f32 %v1142, %v1143
      %v1145 = vrot.slane %v1144, 2
      %v1146 = vmax.f32 %v1144, %v1145
      %v1147 = vrot.slane %v1146, 1
      %v1148 = vmax.f32 %v1146, %v1147
      %v1149 = vsel %vm402, %v338, -inf
      %v1150 = vsel %vm402, %v340, -inf
      %v1151 = vmax.f32 %v1149, %v1150
      %v1152 = vsel %vm402, %v342, -inf
      %v1153 = vmax.f32 %v1151, %v1152
      %v1154 = vsel %vm402, %v344, -inf
      %v1155 = vmax.f32 %v1153, %v1154
      %v1156 = vsel %vm402, %v339, -inf
      %v1157 = vsel %vm402, %v341, -inf
      %v1158 = vmax.f32 %v1156, %v1157
      %v1159 = vsel %vm402, %v343, -inf
      %v1160 = vmax.f32 %v1158, %v1159
      %v1161 = vsel %vm402, %v345, -inf
      %v1162 = vmax.f32 %v1160, %v1161
      %v1163 = vsel %vm402, %v370, -inf
      %v1164 = vsel %vm402, %v372, -inf
      %v1165 = vmax.f32 %v1163, %v1164
      %v1166 = vsel %vm402, %v374, -inf
      %v1167 = vmax.f32 %v1165, %v1166
      %v1168 = vsel %vm402, %v376, -inf
      %v1169 = vmax.f32 %v1167, %v1168
      %v1170 = vsel %vm402, %v371, -inf
      %v1171 = vsel %vm402, %v373, -inf
      %v1172 = vmax.f32 %v1170, %v1171
      %v1173 = vsel %vm402, %v375, -inf
      %v1174 = vmax.f32 %v1172, %v1173
      %v1175 = vsel %vm402, %v377, -inf
      %v1176 = vmax.f32 %v1174, %v1175
      %v1177 = vsel %vm402, %v1155, -inf
      %v1178 = vsel %vm402, %v1169, -inf
      %v1179 = vmax.f32 %v1177, %v1178
      %v1180 = vsel %vm402, %v1162, -inf
      %v1181 = vsel %vm402, %v1176, -inf
      %v1182 = vmax.f32 %v1180, %v1181
      %v1183 = vsel %vm437, %v1179, -inf
      %v1184 = vrot.slane %v1183, 4
      %v1185 = vmax.f32 %v1183, %v1184
      %v1186 = vrot.slane %v1185, 2
      %v1187 = vmax.f32 %v1185, %v1186
      %v1188 = vrot.slane %v1187, 1
      %v1189 = vmax.f32 %v1187, %v1188
      %v1190 = vsel %vm445, %v1179, -inf
      %v1191 = vrot.slane %v1190, 4
      %v1192 = vmax.f32 %v1190, %v1191
      %v1193 = vrot.slane %v1192, 2
      %v1194 = vmax.f32 %v1192, %v1193
      %v1195 = vrot.slane %v1194, 1
      %v1196 = vmax.f32 %v1194, %v1195
      %v1197 = vsel %vm437, %v1182, -inf
      %v1198 = vrot.slane %v1197, 4
      %v1199 = vmax.f32 %v1197, %v1198
      %v1200 = vrot.slane %v1199, 2
      %v1201 = vmax.f32 %v1199, %v1200
      %v1202 = vrot.slane %v1201, 1
      %v1203 = vmax.f32 %v1201, %v1202
      %v1204 = vsel %vm445, %v1182, -inf
      %v1205 = vrot.slane %v1204, 4
      %v1206 = vmax.f32 %v1204, %v1205
      %v1207 = vrot.slane %v1206, 2
      %v1208 = vmax.f32 %v1206, %v1207
      %v1209 = vrot.slane %v1208, 1
      %v1210 = vmax.f32 %v1208, %v1209
      %v1211 = vsel %vm402, %v346, -inf
      %v1212 = vsel %vm402, %v348, -inf
      %v1213 = vmax.f32 %v1211, %v1212
      %v1214 = vsel %vm402, %v350, -inf
      %v1215 = vmax.f32 %v1213, %v1214
      %v1216 = vsel %vm402, %v352, -inf
      %v1217 = vmax.f32 %v1215, %v1216
      %v1218 = vsel %vm402, %v347, -inf
      %v1219 = vsel %vm402, %v349, -inf
      %v1220 = vmax.f32 %v1218, %v1219
      %v1221 = vsel %vm402, %v351, -inf
      %v1222 = vmax.f32 %v1220, %v1221
      %v1223 = vsel %vm402, %v353, -inf
      %v1224 = vmax.f32 %v1222, %v1223
      %v1225 = vsel %vm402, %v378, -inf
      %v1226 = vsel %vm402, %v380, -inf
      %v1227 = vmax.f32 %v1225, %v1226
      %v1228 = vsel %vm402, %v382, -inf
      %v1229 = vmax.f32 %v1227, %v1228
      %v1230 = vsel %vm402, %v384, -inf
      %v1231 = vmax.f32 %v1229, %v1230
      %v1232 = vsel %vm402, %v379, -inf
      %v1233 = vsel %vm402, %v381, -inf
      %v1234 = vmax.f32 %v1232, %v1233
      %v1235 = vsel %vm402, %v383, -inf
      %v1236 = vmax.f32 %v1234, %v1235
      %v1237 = vsel %vm402, %v385, -inf
      %v1238 = vmax.f32 %v1236, %v1237
      %v1239 = vsel %vm402, %v1217, -inf
      %v1240 = vsel %vm402, %v1231, -inf
      %v1241 = vmax.f32 %v1239, %v1240
      %v1242 = vsel %vm402, %v1224, -inf
      %v1243 = vsel %vm402, %v1238, -inf
      %v1244 = vmax.f32 %v1242, %v1243
      %v1245 = vsel %vm437, %v1241, -inf
      %v1246 = vrot.slane %v1245, 4
      %v1247 = vmax.f32 %v1245, %v1246
      %v1248 = vrot.slane %v1247, 2
      %v1249 = vmax.f32 %v1247, %v1248
      %v1250 = vrot.slane %v1249, 1
      %v1251 = vmax.f32 %v1249, %v1250
      %v1252 = vsel %vm445, %v1241, -inf
      %v1253 = vrot.slane %v1252, 4
      %v1254 = vmax.f32 %v1252, %v1253
      %v1255 = vrot.slane %v1254, 2
      %v1256 = vmax.f32 %v1254, %v1255
      %v1257 = vrot.slane %v1256, 1
      %v1258 = vmax.f32 %v1256, %v1257
      %v1259 = vsel %vm437, %v1244, -inf
      %v1260 = vrot.slane %v1259, 4
      %v1261 = vmax.f32 %v1259, %v1260
      %v1262 = vrot.slane %v1261, 2
      %v1263 = vmax.f32 %v1261, %v1262
      %v1264 = vrot.slane %v1263, 1
      %v1265 = vmax.f32 %v1263, %v1264
      %v1266 = vsel %vm445, %v1244, -inf
      %v1267 = vrot.slane %v1266, 4
      %v1268 = vmax.f32 %v1266, %v1267
      %v1269 = vrot.slane %v1268, 2
      %v1270 = vmax.f32 %v1268, %v1269
      %v1271 = vrot.slane %v1270, 1
      %v1272 = vmax.f32 %v1270, %v1271
      %v1273 = vsel %vm402, %v354, -inf
      %v1274 = vsel %vm402, %v356, -inf
      %v1275 = vmax.f32 %v1273, %v1274
      %v1276 = vsel %vm402, %v358, -inf
      %v1277 = vmax.f32 %v1275, %v1276
      %v1278 = vsel %vm402, %v360, -inf
      %v1279 = vmax.f32 %v1277, %v1278
      %v1280 = vsel %vm402, %v355, -inf
      %v1281 = vsel %vm402, %v357, -inf
      %v1282 = vmax.f32 %v1280, %v1281
      %v1283 = vsel %vm402, %v359, -inf
      %v1284 = vmax.f32 %v1282, %v1283
      %v1285 = vsel %vm402, %v361, -inf
      %v1286 = vmax.f32 %v1284, %v1285
      %v1287 = vsel %vm402, %v386, -inf
      %v1288 = vsel %vm402, %v388, -inf
      %v1289 = vmax.f32 %v1287, %v1288
      %v1290 = vsel %vm402, %v390, -inf
      %v1291 = vmax.f32 %v1289, %v1290
      %v1292 = vsel %vm402, %v392, -inf
      %v1293 = vmax.f32 %v1291, %v1292
      %v1294 = vsel %vm402, %v387, -inf
      %v1295 = vsel %vm402, %v389, -inf
      %v1296 = vmax.f32 %v1294, %v1295
      %v1297 = vsel %vm402, %v391, -inf
      %v1298 = vmax.f32 %v1296, %v1297
      %v1299 = vsel %vm402, %v393, -inf
      %v1300 = vmax.f32 %v1298, %v1299
      %v1301 = vsel %vm402, %v1279, -inf
      %v1302 = vsel %vm402, %v1293, -inf
      %v1303 = vmax.f32 %v1301, %v1302
      %v1304 = vsel %vm402, %v1286, -inf
      %v1305 = vsel %vm402, %v1300, -inf
      %v1306 = vmax.f32 %v1304, %v1305
      %v1307 = vsel %vm437, %v1303, -inf
      %v1308 = vrot.slane %v1307, 4
      %v1309 = vmax.f32 %v1307, %v1308
      %v1310 = vrot.slane %v1309, 2
      %v1311 = vmax.f32 %v1309, %v1310
      %v1312 = vrot.slane %v1311, 1
      %v1313 = vmax.f32 %v1311, %v1312
      %v1314 = vsel %vm445, %v1303, -inf
      %v1315 = vrot.slane %v1314, 4
      %v1316 = vmax.f32 %v1314, %v1315
      %v1317 = vrot.slane %v1316, 2
      %v1318 = vmax.f32 %v1316, %v1317
      %v1319 = vrot.slane %v1318, 1
      %v1320 = vmax.f32 %v1318, %v1319
      %v1321 = vsel %vm437, %v1306, -inf
      %v1322 = vrot.slane %v1321, 4
      %v1323 = vmax.f32 %v1321, %v1322
      %v1324 = vrot.slane %v1323, 2
      %v1325 = vmax.f32 %v1323, %v1324
      %v1326 = vrot.slane %v1325, 1
      %v1327 = vmax.f32 %v1325, %v1326
      %v1328 = vsel %vm445, %v1306, -inf
      %v1329 = vrot.slane %v1328, 4
      %v1330 = vmax.f32 %v1328, %v1329
      %v1331 = vrot.slane %v1330, 2
      %v1332 = vmax.f32 %v1330, %v1331
      %v1333 = vrot.slane %v1332, 1
      %v1334 = vmax.f32 %v1332, %v1333
      %v1335 = vsel %vm402, %v362, -inf
      %v1336 = vsel %vm402, %v364, -inf
      %v1337 = vmax.f32 %v1335, %v1336
      %v1338 = vsel %vm402, %v366, -inf
      %v1339 = vmax.f32 %v1337, %v1338
      %v1340 = vsel %vm402, %v368, -inf
      %v1341 = vmax.f32 %v1339, %v1340
      %v1342 = vsel %vm402, %v363, -inf
      %v1343 = vsel %vm402, %v365, -inf
      %v1344 = vmax.f32 %v1342, %v1343
      %v1345 = vsel %vm402, %v367, -inf
      %v1346 = vmax.f32 %v1344, %v1345
      %v1347 = vsel %vm402, %v369, -inf
      %v1348 = vmax.f32 %v1346, %v1347
      %v1349 = vsel %vm402, %v394, -inf
      %v1350 = vsel %vm402, %v396, -inf
      %v1351 = vmax.f32 %v1349, %v1350
      %v1352 = vsel %vm402, %v398, -inf
      %v1353 = vmax.f32 %v1351, %v1352
      %v1354 = vsel %vm402, %v400, -inf
      %v1355 = vmax.f32 %v1353, %v1354
      %v1356 = vsel %vm402, %v395, -inf
      %v1357 = vsel %vm402, %v397, -inf
      %v1358 = vmax.f32 %v1356, %v1357
      %v1359 = vsel %vm402, %v399, -inf
      %v1360 = vmax.f32 %v1358, %v1359
      %v1361 = vsel %vm402, %v401, -inf
      %v1362 = vmax.f32 %v1360, %v1361
      %v1363 = vsel %vm402, %v1341, -inf
      %v1364 = vsel %vm402, %v1355, -inf
      %v1365 = vmax.f32 %v1363, %v1364
      %v1366 = vsel %vm402, %v1348, -inf
      %v1367 = vsel %vm402, %v1362, -inf
      %v1368 = vmax.f32 %v1366, %v1367
      %v1369 = vsel %vm437, %v1365, -inf
      %v1370 = vrot.slane %v1369, 4
      %v1371 = vmax.f32 %v1369, %v1370
      %v1372 = vrot.slane %v1371, 2
      %v1373 = vmax.f32 %v1371, %v1372
      %v1374 = vrot.slane %v1373, 1
      %v1375 = vmax.f32 %v1373, %v1374
      %v1376 = vsel %vm445, %v1365, -inf
      %v1377 = vrot.slane %v1376, 4
      %v1378 = vmax.f32 %v1376, %v1377
      %v1379 = vrot.slane %v1378, 2
      %v1380 = vmax.f32 %v1378, %v1379
      %v1381 = vrot.slane %v1380, 1
      %v1382 = vmax.f32 %v1380, %v1381
      %v1383 = vsel %vm437, %v1368, -inf
      %v1384 = vrot.slane %v1383, 4
      %v1385 = vmax.f32 %v1383, %v1384
      %v1386 = vrot.slane %v1385, 2
      %v1387 = vmax.f32 %v1385, %v1386
      %v1388 = vrot.slane %v1387, 1
      %v1389 = vmax.f32 %v1387, %v1388
      %v1390 = vsel %vm445, %v1368, -inf
      %v1391 = vrot.slane %v1390, 4
      %v1392 = vmax.f32 %v1390, %v1391
      %v1393 = vrot.slane %v1392, 2
      %v1394 = vmax.f32 %v1392, %v1393
      %v1395 = vrot.slane %v1394, 1
      %v1396 = vmax.f32 %v1394, %v1395
      %v1397 = vmax.f32 %v444, %v452
      %v1398 = vmax.f32 %v1397, %v459
      %v1399 = vmax.f32 %v1398, %v466
      %v1400 = vmax.f32 %v1399, %v507
      %v1401 = vmax.f32 %v1400, %v514
      %v1402 = vmax.f32 %v1401, %v521
      %v1403 = vmax.f32 %v1402, %v528
      %v1404 = vmax.f32 %v1403, %v569
      %v1405 = vmax.f32 %v1404, %v576
      %v1406 = vmax.f32 %v1405, %v583
      %v1407 = vmax.f32 %v1406, %v590
      %v1408 = vmax.f32 %v1407, %v631
      %v1409 = vmax.f32 %v1408, %v638
      %v1410 = vmax.f32 %v1409, %v645
      %v1411 = vmax.f32 %v1410, %v652
      %v1412 = vmax.f32 %v1411, %v693
      %v1413 = vmax.f32 %v1412, %v700
      %v1414 = vmax.f32 %v1413, %v707
      %v1415 = vmax.f32 %v1414, %v714
      %v1416 = vmax.f32 %v1415, %v755
      %v1417 = vmax.f32 %v1416, %v762
      %v1418 = vmax.f32 %v1417, %v769
      %v1419 = vmax.f32 %v1418, %v776
      %v1420 = vmax.f32 %v1419, %v817
      %v1421 = vmax.f32 %v1420, %v824
      %v1422 = vmax.f32 %v1421, %v831
      %v1423 = vmax.f32 %v1422, %v838
      %v1424 = vmax.f32 %v1423, %v879
      %v1425 = vmax.f32 %v1424, %v886
      %v1426 = vmax.f32 %v1425, %v893
      %v1427 = vmax.f32 %v1426, %v900
      %v1428 = vmax.f32 %v1427, %v941
      %v1429 = vmax.f32 %v1428, %v948
      %v1430 = vmax.f32 %v1429, %v955
      %v1431 = vmax.f32 %v1430, %v962
      %v1432 = vmax.f32 %v1431, %v1003
      %v1433 = vmax.f32 %v1432, %v1010
      %v1434 = vmax.f32 %v1433, %v1017
      %v1435 = vmax.f32 %v1434, %v1024
      %v1436 = vmax.f32 %v1435, %v1065
      %v1437 = vmax.f32 %v1436, %v1072
      %v1438 = vmax.f32 %v1437, %v1079
      %v1439 = vmax.f32 %v1438, %v1086
      %v1440 = vmax.f32 %v1439, %v1127
      %v1441 = vmax.f32 %v1440, %v1134
      %v1442 = vmax.f32 %v1441, %v1141
      %v1443 = vmax.f32 %v1442, %v1148
      %v1444 = vmax.f32 %v1443, %v1189
      %v1445 = vmax.f32 %v1444, %v1196
      %v1446 = vmax.f32 %v1445, %v1203
      %v1447 = vmax.f32 %v1446, %v1210
      %v1448 = vmax.f32 %v1447, %v1251
      %v1449 = vmax.f32 %v1448, %v1258
      %v1450 = vmax.f32 %v1449, %v1265
      %v1451 = vmax.f32 %v1450, %v1272
      %v1452 = vmax.f32 %v1451, %v1313
      %v1453 = vmax.f32 %v1452, %v1320
      %v1454 = vmax.f32 %v1453, %v1327
      %v1455 = vmax.f32 %v1454, %v1334
      %v1456 = vmax.f32 %v1455, %v1375
      %v1457 = vmax.f32 %v1456, %v1382
      %v1458 = vmax.f32 %v1457, %v1389
      %v1459 = vmax.f32 %v1458, %v1396
      %v1460 = vmax.f32 %v1397, %v507
      %v1461 = vmax.f32 %v1460, %v514
      %v1462 = vmax.f32 %v1461, %v693
      %v1463 = vmax.f32 %v1462, %v700
      %v1464 = vmax.f32 %v1463, %v755
      %v1465 = vmax.f32 %v1464, %v762
      %v1466 = vmax.f32 %v459, %v466
      %v1467 = vmax.f32 %v1466, %v521
      %v1468 = vmax.f32 %v1467, %v528
      %v1469 = vmax.f32 %v1468, %v707
      %v1470 = vmax.f32 %v1469, %v714
      %v1471 = vmax.f32 %v1470, %v769
      %v1472 = vmax.f32 %v1471, %v776
      %v1473 = vadd.f32 %v1465, %v1472
      %v1474 = vmax.f32 %v569, %v576
      %v1475 = vmax.f32 %v1474, %v631
      %v1476 = vmax.f32 %v1475, %v638
      %v1477 = vmax.f32 %v1476, %v817
      %v1478 = vmax.f32 %v1477, %v824
      %v1479 = vmax.f32 %v1478, %v879
      %v1480 = vmax.f32 %v1479, %v886
      %v1481 = vadd.f32 %v1473, %v1480
      %v1482 = vmax.f32 %v583, %v590
      %v1483 = vmax.f32 %v1482, %v645
      %v1484 = vmax.f32 %v1483, %v652
      %v1485 = vmax.f32 %v1484, %v831
      %v1486 = vmax.f32 %v1485, %v838
      %v1487 = vmax.f32 %v1486, %v893
      %v1488 = vmax.f32 %v1487, %v900
      %v1489 = vadd.f32 %v1481, %v1488
      %v1490 = vmul.f32 %v1489, 0.25
      %v1491 = vmax.f32 %v941, %v948
      %v1492 = vmax.f32 %v1491, %v1003
      %v1493 = vmax.f32 %v1492, %v1010
      %v1494 = vmax.f32 %v1493, %v1189
      %v1495 = vmax.f32 %v1494, %v1196
      %v1496 = vmax.f32 %v1495, %v1251
      %v1497 = vmax.f32 %v1496, %v1258
      %v1498 = vmax.f32 %v955, %v962
      %v1499 = vmax.f32 %v1498, %v1017
      %v1500 = vmax.f32 %v1499, %v1024
      %v1501 = vmax.f32 %v1500, %v1203
      %v1502 = vmax.f32 %v1501, %v1210
      %v1503 = vmax.f32 %v1502, %v1265
      %v1504 = vmax.f32 %v1503, %v1272
      %v1505 = vadd.f32 %v1497, %v1504
      %v1506 = vmax.f32 %v1065, %v1072
      %v1507 = vmax.f32 %v1506, %v1127
      %v1508 = vmax.f32 %v1507, %v1134
      %v1509 = vmax.f32 %v1508, %v1313
      %v1510 = vmax.f32 %v1509, %v1320
      %v1511 = vmax.f32 %v1510, %v1375
      %v1512 = vmax.f32 %v1511, %v1382
      %v1513 = vadd.f32 %v1505, %v1512
      %v1514 = vmax.f32 %v1079, %v1086
      %v1515 = vmax.f32 %v1514, %v1141
      %v1516 = vmax.f32 %v1515, %v1148
      %v1517 = vmax.f32 %v1516, %v1327
      %v1518 = vmax.f32 %v1517, %v1334
      %v1519 = vmax.f32 %v1518, %v1389
      %v1520 = vmax.f32 %v1519, %v1396
      %v1521 = vadd.f32 %v1513, %v1520
      %v1522 = vmul.f32 %v1521, 0.25
      %v1523 = vadd.f32 %v444, %v452
      %v1524 = vadd.f32 %v1523, %v459
      %v1525 = vadd.f32 %v1524, %v466
      %v1526 = vadd.f32 %v1525, %v507
      %v1527 = vadd.f32 %v1526, %v514
      %v1528 = vadd.f32 %v1527, %v521
      %v1529 = vadd.f32 %v1528, %v528
      %v1530 = vadd.f32 %v1529, %v569
      %v1531 = vadd.f32 %v1530, %v576
      %v1532 = vadd.f32 %v1531, %v583
      %v1533 = vadd.f32 %v1532, %v590
      %v1534 = vadd.f32 %v1533, %v631
      %v1535 = vadd.f32 %v1534, %v638
      %v1536 = vadd.f32 %v1535, %v645
      %v1537 = vadd.f32 %v1536, %v652
      %v1538 = vmul.f32 %v1537, 0.0625
      %v1539 = vadd.f32 %v693, %v700
      %v1540 = vadd.f32 %v1539, %v707
      %v1541 = vadd.f32 %v1540, %v714
      %v1542 = vadd.f32 %v1541, %v755
      %v1543 = vadd.f32 %v1542, %v762
      %v1544 = vadd.f32 %v1543, %v769
      %v1545 = vadd.f32 %v1544, %v776
      %v1546 = vadd.f32 %v1545, %v817
      %v1547 = vadd.f32 %v1546, %v824
      %v1548 = vadd.f32 %v1547, %v831
      %v1549 = vadd.f32 %v1548, %v838
      %v1550 = vadd.f32 %v1549, %v879
      %v1551 = vadd.f32 %v1550, %v886
      %v1552 = vadd.f32 %v1551, %v893
      %v1553 = vadd.f32 %v1552, %v900
      %v1554 = vmul.f32 %v1553, 0.0625
      %v1555 = vadd.f32 %v941, %v948
      %v1556 = vadd.f32 %v1555, %v955
      %v1557 = vadd.f32 %v1556, %v962
      %v1558 = vadd.f32 %v1557, %v1003
      %v1559 = vadd.f32 %v1558, %v1010
      %v1560 = vadd.f32 %v1559, %v1017
      %v1561 = vadd.f32 %v1560, %v1024
      %v1562 = vadd.f32 %v1561, %v1065
      %v1563 = vadd.f32 %v1562, %v1072
      %v1564 = vadd.f32 %v1563, %v1079
      %v1565 = vadd.f32 %v1564, %v1086
      %v1566 = vadd.f32 %v1565, %v1127
      %v1567 = vadd.f32 %v1566, %v1134
      %v1568 = vadd.f32 %v1567, %v1141
      %v1569 = vadd.f32 %v1568, %v1148
      %v1570 = vmul.f32 %v1569, 0.0625
      %v1571 = vadd.f32 %v1189, %v1196
      %v1572 = vadd.f32 %v1571, %v1203
      %v1573 = vadd.f32 %v1572, %v1210
      %v1574 = vadd.f32 %v1573, %v1251
      %v1575 = vadd.f32 %v1574, %v1258
      %v1576 = vadd.f32 %v1575, %v1265
      %v1577 = vadd.f32 %v1576, %v1272
      %v1578 = vadd.f32 %v1577, %v1313
      %v1579 = vadd.f32 %v1578, %v1320
      %v1580 = vadd.f32 %v1579, %v1327
      %v1581 = vadd.f32 %v1580, %v1334
      %v1582 = vadd.f32 %v1581, %v1375
      %v1583 = vadd.f32 %v1582, %v1382
      %v1584 = vadd.f32 %v1583, %v1389
      %v1585 = vadd.f32 %v1584, %v1396
      %v1586 = vmul.f32 %v1585, 0.0625
      %vm1587 = vcmask 1040384
      %v1588 = vsel %vm1587, %v1459, %v1490
      %vm1589 = vcmask 1041408
      %v1590 = vsel %vm1589, %v1588, %v1522
      %vm1591 = vcmask 1042432
      %v1592 = vsel %vm1591, %v1590, %v1538
      %vm1593 = vcmask 1043456
      %v1594 = vsel %vm1593, %v1592, %v1554
      %vm1595 = vcmask 1044480
      %v1596 = vsel %vm1595, %v1594, %v1570
      %vm1597 = vcmask 1045504
      %v1598 = vsel %vm1597, %v1596, %v1586
      %vm1599 = vcmask 30720
      %1600 = vst.msk [vmem:[%s145] sm:$0x7f] %vm1599, %v1598
      %p1601 = scmp.lt.s32.totalorder %s16, 1
      %s1602 = scalar_select %p1601, %s16, 1
      %p1603 = scmp.lt.s32.totalorder %s17, 0
      %s1604 = scalar_select %p1603, %s17, 0
      %s1605 = sadd.s32 %s1604, %s1602
      %s1606 = smul.addr %s1605, 8
      %s1607 = scalar_lea.vmem %s1, %s1606
      // Predicated region
      $region25: #{tpu_custom_call.1} parent=23 // pred_check
        %p1608 = pneg %p72
      $region26: #{tpu_custom_call.1} parent=23 // pred_check_branch
        %1610 = sbr.rel (%p1608) target = $region28
      $region27: #{tpu_custom_call.1} parent=23 // pred_region
        _
      $region28: #{tpu_custom_call.1} parent=23 // pred_fallthru
        _
    $region24: #{tpu_custom_call.1} parent=5 // pred_fallthru
      _
    %p1611 = scmp.le.s32.totalorder 2, %s7
    // Predicated region
    $region29: #{tpu_custom_call.1} parent=5 // pred_check
      %p1612 = pneg %p1611
    $region30: #{tpu_custom_call.1} parent=5 // pred_check_branch
      %1614 = sbr.rel (%p1612) target = $region32
    $region31: #{tpu_custom_call.1} parent=5 // pred_region
      %s1615 = ssub.s32 %s7, 2
      // Predicated region
      $region33: #{tpu_custom_call.1} parent=31 // pred_check
        %p1616 = pneg %p78
      $region34: #{tpu_custom_call.1} parent=31 // pred_check_branch
        %1618 = sbr.rel (%p1616) target = $region36
      $region35: #{tpu_custom_call.1} parent=31 // pred_region
        %p1619 = scmp.lt.s32.totalorder %s18, 1
        %s1620 = scalar_select %p1619, %s18, 1
        %p1621 = scmp.lt.s32.totalorder %s19, 0
        %s1622 = scalar_select %p1621, %s19, 0
        %s1623 = sadd.s32 %s1622, %s1620
        %s1624 = smul.addr %s1623, 8
        %s1625 = scalar_lea.vmem %s1, %s1624
      $region36: #{tpu_custom_call.1} parent=31 // pred_fallthru
        _
    $region32: #{tpu_custom_call.1} parent=5 // pred_fallthru
      _
  $region6: #{tpu_custom_call.1} parent=0 // loop_footer
    %s11 = sadd.s32 1, %s7
  $region7: #{tpu_custom_call.1} parent=0 // loop_footer_branch
    %6 = sbr.rel target = $region3
  $region8: #{tpu_custom_call.1} parent=0 // loop_exit
    _

</llo_original>
